<compile_context>
chip_gen: v7x
topology: tpu7x:2x2x1
jax: 0.10.0
libtpu: 0.0.40
codegen_flags: <defaults>
</compile_context>

<pallas_src>
import functools

import jax
import jax.numpy as jnp
import numpy as np
from jax.experimental import pallas as pl
from jax.experimental.pallas import tpu as pltpu


def _fused_blocks_kernel(x_ref, wb_ref, sc_ref, bt_ref, o_ref, pad_ref,
                         *, n_blocks, H, C, NWC, G, eps):
    """Runs n_blocks stride-1 BasicBlocks on lane-dense rows.

    x_ref  : (H, N*W*C)             f32  input rows (lane = (n*W + w)*C + c)
    wb_ref : (n_blocks*6, NWC, NWC) bf16 block-diag banded conv matrices [(blk*2+conv)*3+ky]
    sc_ref : (n_blocks*2, NWC)      f32  BN gamma pre-broadcast to lanes [blk*2 + bn]
    bt_ref : (n_blocks*2, NWC)      f32  BN beta  pre-broadcast to lanes
    o_ref  : (H, NWC)               f32  output rows (dense 128-lane stores)
    pad_ref: (H+2, NWC)             f32  H-halo scratch (halo rows zeroed once)
    """
    inv_count = 1.0 / float(G * H)        # BN count = N*H*W = G*H
    n_steps = G.bit_length() - 1          # log2(G) roll-reduce steps (G is a power of two)

    def conv3x3(base):
        # 3x3 / stride 1 / pad 1 == three (H, NWC) @ (NWC, NWC) matmuls; the kx taps and the
        # 'same' W-padding are zero entries of the banded matrices, H-padding is the halo.
        acc = jnp.dot(pad_ref[0:H, :].astype(jnp.bfloat16), wb_ref[base],
                      preferred_element_type=jnp.float32)
        acc = acc + jnp.dot(pad_ref[1:H + 1, :].astype(jnp.bfloat16), wb_ref[base + 1],
                            preferred_element_type=jnp.float32)
        acc = acc + jnp.dot(pad_ref[2:H + 2, :].astype(jnp.bfloat16), wb_ref[base + 2],
                            preferred_element_type=jnp.float32)
        return acc

    def chan_allreduce(v):
        # (1, NWC): channel c occupies lanes {g*C + c}; log2(G) XLU rotate+add passes leave
        # the per-channel total replicated in every one of its lanes (no MXU on this path).
        for i in range(n_steps):
            v = v + pltpu.roll(v, shift=C << i, axis=1)
        return v

    def batchnorm(y, idx):
        # Train-mode BatchNorm2d (biased batch variance), applied as a single FMA on y.
        s1 = chan_allreduce(jnp.sum(y, axis=0, keepdims=True))
        s2 = chan_allreduce(jnp.sum(y * y, axis=0, keepdims=True))
        mean = s1 * inv_count
        var = s2 * inv_count - mean * mean
        scale = sc_ref[idx:idx + 1, :] * jax.lax.rsqrt(var + eps)
        shift = bt_ref[idx:idx + 1, :] - mean * scale
        return y * scale + shift

    # Zero ONLY the 1-row H halo, once; it stays zero for every conv of every block.
    pad_ref[0:1, :] = jnp.zeros((1, NWC), jnp.float32)
    pad_ref[H + 1:H + 2, :] = jnp.zeros((1, NWC), jnp.float32)

    z = x_ref[...]
    for blk in range(n_blocks):            # unrolled at trace time
        base = 6 * blk
        # conv1 -> relu -> bn1
        pad_ref[1:H + 1, :] = z
        y = conv3x3(base)
        y = jnp.maximum(y, 0.0)
        y = batchnorm(y, 2 * blk)
        # conv2 -> + residual -> relu -> bn2   (Dropout2d(p=0) is the identity)
        pad_ref[1:H + 1, :] = y
        y = conv3x3(base + 3)
        y = z + y
        y = jnp.maximum(y, 0.0)
        y = batchnorm(y, 2 * blk + 1)
        z = y
    o_ref[...] = z


def _band_conv_matrix(w_oihw, W):
    """PyTorch OIHW (Cout, Cin, 3, 3) -> (3, W*Cin, W*Cout) banded matrices.

    band[ky][x*Cin + ci, w*Cout + co] = w[co, ci, ky, x - w + 1] inside the band, else 0, so
    conv_out_row(h) = sum_ky padded_row(h + ky) @ band[ky], with 'same' W-padding realized by
    the zero entries outside the band.
    """
    Cout, Cin, KH, KW = w_oihw.shape
    # sel[kx, x, w] = 1  iff  x == w + kx - 1   (valid input column for output column w)
    sel = np.stack([np.eye(W, k=1 - kx, dtype=np.float32) for kx in range(KW)])
    band = jnp.einsum('oikK,Kxw->kxiwo', w_oihw.astype(jnp.float32), jnp.asarray(sel))
    return band.reshape(KH, W * Cin, W * Cout)


def _block_diag(band, N):
    """(3, R, S) -> (3, N*R, N*S) block-diagonal (kron(I_N, band)); one block per image so
    the lane-folded batch never mixes across images."""
    KH, R, S = band.shape
    out = jnp.zeros((KH, N * R, N * S), band.dtype)
    for n in range(N):
        out = out.at[:, n * R:(n + 1) * R, n * S:(n + 1) * S].set(band)
    return out


def basic_block_chain_forward(x_nchw, blocks, eps=1e-5):
    """Fused forward of a chain of stride-1 BasicBlocks in one pallas_call.

    x_nchw: (N, C, H, W) f32.
    blocks: list of (w1, w2, g1, b1, g2, b2); w*: (C, C, 3, 3) OIHW, no bias; g*/b*: (C,).
    """
    N, C, H, W = x_nchw.shape
    NWC = N * W * C
    G = N * W                                       # channel-group count in the lane dim
    if G & (G - 1):
        raise ValueError("N*W must be a power of two for the lane roll-reduce")
    if NWC % 128:
        # TODO(synk): when W*C >= 128 keep N in sublanes instead of lane-folding it.
        raise ValueError("N*W*C must be a multiple of 128 lanes")

    # Layout glue (only at the chain boundary): NCHW -> lane-dense rows (H, N*W*C).
    x_rows = jnp.transpose(x_nchw, (2, 0, 3, 1)).astype(jnp.float32).reshape(H, NWC)

    band_parts, gamma_parts, beta_parts = [], [], []
    for (w1, w2, g1, b1, g2, b2) in blocks:
        band_parts.append(_block_diag(_band_conv_matrix(w1, W), N))
        band_parts.append(_block_diag(_band_conv_matrix(w2, W), N))
        gamma_parts += [jnp.tile(g1.reshape(1, C), (1, G)),
                        jnp.tile(g2.reshape(1, C), (1, G))]
        beta_parts += [jnp.tile(b1.reshape(1, C), (1, G)),
                       jnp.tile(b2.reshape(1, C), (1, G))]
    wb = jnp.concatenate(band_parts, axis=0).astype(jnp.bfloat16)     # (6*nb, NWC, NWC)
    sc = jnp.concatenate(gamma_parts, axis=0).astype(jnp.float32)     # (2*nb, NWC)
    bt = jnp.concatenate(beta_parts, axis=0).astype(jnp.float32)      # (2*nb, NWC)

    kernel = functools.partial(_fused_blocks_kernel, n_blocks=len(blocks),
                               H=H, C=C, NWC=NWC, G=G, eps=eps)
    vmem = pl.BlockSpec(memory_space=pltpu.MemorySpace.VMEM)

    out_rows = pl.pallas_call(
        kernel,
        out_shape=jax.ShapeDtypeStruct((H, NWC), jnp.float32),
        in_specs=[vmem] * 4,
        out_specs=vmem,
        scratch_shapes=[pltpu.VMEM((H + 2, NWC), jnp.float32)],
        # Rows + bf16 bands for the whole chain are ~0.5 MiB here; the explicit budget is
        # headroom only.  TODO(synk): at large C stream the bands from HBM with a
        # (ky, column-tile) BlockSpec grid instead of holding them resident (v7x: 64 MiB).
        compiler_params=pltpu.CompilerParams(vmem_limit_bytes=32 * 1024 * 1024),
    )(x_rows, wb, sc, bt)

    out = out_rows.reshape(H, N, W, C)
    return jnp.transpose(out, (1, 3, 0, 2))         # back to NCHW


def _q(a):
    # Mirror the kernel's numerical contract: bf16 MXU operands, f32 accumulation (this is
    # also XLA:TPU's default matmul/conv precision for f32 inputs).
    return a.astype(jnp.bfloat16).astype(jnp.float32)


def _reference_block(x, w1, w2, g1, b1, g2, b2, eps=1e-5):
    """Pure-JAX reference of the PyTorch BasicBlock forward (NCHW, train-mode BN)."""
    def conv(v, w):
        return jax.lax.conv_general_dilated(
            _q(v), _q(w), window_strides=(1, 1), padding=((1, 1), (1, 1)),
            dimension_numbers=("NCHW", "OIHW", "NCHW"))

    def bnorm(v, g, b):
        mean = jnp.mean(v, axis=(0, 2, 3), keepdims=True)
        var = jnp.mean((v - mean) ** 2, axis=(0, 2, 3), keepdims=True)
        return ((v - mean) * jax.lax.rsqrt(var + eps)
                * g.reshape(1, -1, 1, 1) + b.reshape(1, -1, 1, 1))

    out = conv(x, w1)
    out = jnp.maximum(out, 0.0)
    out = bnorm(out, g1, b1)
    out = conv(out, w2)
    out = x + out
    out = jnp.maximum(out, 0.0)
    out = bnorm(out, g2, b2)
    return out


if __name__ == "__main__":
    # Two chained BasicBlock(inplanes=4, planes=4, stride=1, downsample=None, dropout=0):
    # the structure of AudioResNet's layer1 (layers[0]=2) at toy width C=4.
    N, C, H, W = 2, 4, 16, 16
    n_blocks = 2

    keys = jax.random.split(jax.random.PRNGKey(0), 1 + 2 * n_blocks)
    x = jax.random.normal(keys[0], (N, C, H, W), dtype=jnp.float32)

    blocks = []
    for i in range(n_blocks):
        w1 = 0.1 * jax.random.normal(keys[1 + 2 * i], (C, C, 3, 3), dtype=jnp.float32)
        w2 = 0.1 * jax.random.normal(keys[2 + 2 * i], (C, C, 3, 3), dtype=jnp.float32)
        g1 = jnp.ones((C,), jnp.float32)        # bn(planes): weight=1, bias=0
        b1 = jnp.zeros((C,), jnp.float32)
        g2 = jnp.ones((C,), jnp.float32)
        b2 = jnp.zeros((C,), jnp.float32)
        blocks.append((w1, w2, g1, b1, g2, b2))

    out = jax.block_until_ready(basic_block_chain_forward(x, blocks))

    ref = x
    for p in blocks:
        ref = _reference_block(ref, *p)
    ref = jax.block_until_ready(ref)

    # Both sides use bf16-rounded conv operands with f32 accumulation; tolerance absorbs
    # accumulation-order and bf16 rounding-boundary differences across the two fused blocks.
    np.testing.assert_allclose(np.asarray(out), np.asarray(ref), rtol=5e-3, atol=5e-3)

    print("KERNEL_OK")
</pallas_src>

<mosaic_0001>
module attributes {stable_mosaic.version = 11 : i64} {
  func.func @_fused_blocks_kernel(%arg0: memref<16x128xf32, #tpu.memory_space<vmem>>, %arg1: memref<12x128x128xbf16, #tpu.memory_space<vmem>>, %arg2: memref<4x128xf32, #tpu.memory_space<vmem>>, %arg3: memref<4x128xf32, #tpu.memory_space<vmem>>, %arg4: memref<16x128xf32, #tpu.memory_space<vmem>>, %arg5: memref<18x128xf32, #tpu.memory_space<vmem>>) attributes {dimension_semantics = [], scalar_prefetch = 0 : i64, scratch_operands = 1 : i64, tpu.core_type = #tpu.core_type<tc>} {
    %cst = arith.constant 0.000000e+00 : f32
    %0 = vector.broadcast %cst : f32 to vector<1x128xf32>
    %c0 = arith.constant 0 : index
    %c0_0 = arith.constant 0 : index
    %1 = vector.load %arg5[%c0, %c0_0] : memref<18x128xf32, #tpu.memory_space<vmem>>, vector<1x128xf32>
    tpu.vector_store %arg5[%c0, %c0_0], %0 {strides = array<i32>} : memref<18x128xf32, #tpu.memory_space<vmem>>, vector<1x128xf32>,
    %cst_1 = arith.constant 0.000000e+00 : f32
    %2 = vector.broadcast %cst_1 : f32 to vector<1x128xf32>
    %c17 = arith.constant 17 : index
    %c0_2 = arith.constant 0 : index
    %3 = vector.load %arg5[%c17, %c0_2] : memref<18x128xf32, #tpu.memory_space<vmem>>, vector<1x128xf32>
    tpu.vector_store %arg5[%c17, %c0_2], %2 {strides = array<i32>} : memref<18x128xf32, #tpu.memory_space<vmem>>, vector<1x128xf32>,
    %c0_3 = arith.constant 0 : index
    %c0_4 = arith.constant 0 : index
    %4 = vector.load %arg0[%c0_3, %c0_4] : memref<16x128xf32, #tpu.memory_space<vmem>>, vector<16x128xf32>
    %c1 = arith.constant 1 : index
    %c0_5 = arith.constant 0 : index
    %5 = vector.load %arg5[%c1, %c0_5] : memref<18x128xf32, #tpu.memory_space<vmem>>, vector<16x128xf32>
    tpu.vector_store %arg5[%c1, %c0_5], %4 {strides = array<i32>} : memref<18x128xf32, #tpu.memory_space<vmem>>, vector<16x128xf32>,
    %c0_6 = arith.constant 0 : index
    %c0_7 = arith.constant 0 : index
    %6 = vector.load %arg5[%c0_6, %c0_7] : memref<18x128xf32, #tpu.memory_space<vmem>>, vector<16x128xf32>
    %7 = arith.truncf %6 : vector<16x128xf32> to vector<16x128xbf16>
    %c0_8 = arith.constant 0 : index
    %c0_9 = arith.constant 0 : index
    %c0_10 = arith.constant 0 : index
    %8 = vector.load %arg1[%c0_8, %c0_9, %c0_10] : memref<12x128x128xbf16, #tpu.memory_space<vmem>>, vector<1x128x128xbf16>
    %9 = vector.shape_cast %8 : vector<1x128x128xbf16> to vector<128x128xbf16>
    %cst_11 = arith.constant dense<0.000000e+00> : vector<16x128xf32>
    %10 = tpu.matmul %7, %9, %cst_11 {dimension_numbers = #tpu.dot_dimension_numbers<[1], [0], [0], [1], [0, 0, 1, 1], [], []>} : vector<16x128xbf16>, vector<128x128xbf16>, vector<16x128xf32> -> vector<16x128xf32>
    %c1_12 = arith.constant 1 : index
    %c0_13 = arith.constant 0 : index
    %11 = vector.load %arg5[%c1_12, %c0_13] : memref<18x128xf32, #tpu.memory_space<vmem>>, vector<16x128xf32>
    %12 = arith.truncf %11 : vector<16x128xf32> to vector<16x128xbf16>
    %c1_14 = arith.constant 1 : index
    %c0_15 = arith.constant 0 : index
    %c0_16 = arith.constant 0 : index
    %13 = vector.load %arg1[%c1_14, %c0_15, %c0_16] : memref<12x128x128xbf16, #tpu.memory_space<vmem>>, vector<1x128x128xbf16>
    %14 = vector.shape_cast %13 : vector<1x128x128xbf16> to vector<128x128xbf16>
    %cst_17 = arith.constant dense<0.000000e+00> : vector<16x128xf32>
    %15 = tpu.matmul %12, %14, %cst_17 {dimension_numbers = #tpu.dot_dimension_numbers<[1], [0], [0], [1], [0, 0, 1, 1], [], []>} : vector<16x128xbf16>, vector<128x128xbf16>, vector<16x128xf32> -> vector<16x128xf32>
    %16 = arith.addf %10, %15 : vector<16x128xf32>
    %c2 = arith.constant 2 : index
    %c0_18 = arith.constant 0 : index
    %17 = vector.load %arg5[%c2, %c0_18] : memref<18x128xf32, #tpu.memory_space<vmem>>, vector<16x128xf32>
    %18 = arith.truncf %17 : vector<16x128xf32> to vector<16x128xbf16>
    %c2_19 = arith.constant 2 : index
    %c0_20 = arith.constant 0 : index
    %c0_21 = arith.constant 0 : index
    %19 = vector.load %arg1[%c2_19, %c0_20, %c0_21] : memref<12x128x128xbf16, #tpu.memory_space<vmem>>, vector<1x128x128xbf16>
    %20 = vector.shape_cast %19 : vector<1x128x128xbf16> to vector<128x128xbf16>
    %cst_22 = arith.constant dense<0.000000e+00> : vector<16x128xf32>
    %21 = tpu.matmul %18, %20, %cst_22 {dimension_numbers = #tpu.dot_dimension_numbers<[1], [0], [0], [1], [0, 0, 1, 1], [], []>} : vector<16x128xbf16>, vector<128x128xbf16>, vector<16x128xf32> -> vector<16x128xf32>
    %22 = arith.addf %16, %21 : vector<16x128xf32>
    %cst_23 = arith.constant 0.000000e+00 : f32
    %23 = vector.broadcast %cst_23 : f32 to vector<16x128xf32>
    %24 = arith.maximumf %22, %23 : vector<16x128xf32>
    %cst_24 = arith.constant dense<0.000000e+00> : vector<128xf32>
    %25 = vector.multi_reduction <add>, %24, %cst_24 [0] : vector<16x128xf32> to vector<128xf32>
    %26 = vector.shape_cast %25 : vector<128xf32> to vector<1x128xf32>
    %c4_i32 = arith.constant 4 : i32
    %27 = tpu.dynamic_rotate %26 by %c4_i32 dim 1 : vector<1x128xf32>, i32 -> vector<1x128xf32>
    %28 = arith.addf %26, %27 : vector<1x128xf32>
    %c8_i32 = arith.constant 8 : i32
    %29 = tpu.dynamic_rotate %28 by %c8_i32 dim 1 : vector<1x128xf32>, i32 -> vector<1x128xf32>
    %30 = arith.addf %28, %29 : vector<1x128xf32>
    %c16_i32 = arith.constant 16 : i32
    %31 = tpu.dynamic_rotate %30 by %c16_i32 dim 1 : vector<1x128xf32>, i32 -> vector<1x128xf32>
    %32 = arith.addf %30, %31 : vector<1x128xf32>
    %c32_i32 = arith.constant 32 : i32
    %33 = tpu.dynamic_rotate %32 by %c32_i32 dim 1 : vector<1x128xf32>, i32 -> vector<1x128xf32>
    %34 = arith.addf %32, %33 : vector<1x128xf32>
    %c64_i32 = arith.constant 64 : i32
    %35 = tpu.dynamic_rotate %34 by %c64_i32 dim 1 : vector<1x128xf32>, i32 -> vector<1x128xf32>
    %36 = arith.addf %34, %35 : vector<1x128xf32>
    %37 = arith.mulf %24, %24 : vector<16x128xf32>
    %cst_25 = arith.constant dense<0.000000e+00> : vector<128xf32>
    %38 = vector.multi_reduction <add>, %37, %cst_25 [0] : vector<16x128xf32> to vector<128xf32>
    %39 = vector.shape_cast %38 : vector<128xf32> to vector<1x128xf32>
    %c4_i32_26 = arith.constant 4 : i32
    %40 = tpu.dynamic_rotate %39 by %c4_i32_26 dim 1 : vector<1x128xf32>, i32 -> vector<1x128xf32>
    %41 = arith.addf %39, %40 : vector<1x128xf32>
    %c8_i32_27 = arith.constant 8 : i32
    %42 = tpu.dynamic_rotate %41 by %c8_i32_27 dim 1 : vector<1x128xf32>, i32 -> vector<1x128xf32>
    %43 = arith.addf %41, %42 : vector<1x128xf32>
    %c16_i32_28 = arith.constant 16 : i32
    %44 = tpu.dynamic_rotate %43 by %c16_i32_28 dim 1 : vector<1x128xf32>, i32 -> vector<1x128xf32>
    %45 = arith.addf %43, %44 : vector<1x128xf32>
    %c32_i32_29 = arith.constant 32 : i32
    %46 = tpu.dynamic_rotate %45 by %c32_i32_29 dim 1 : vector<1x128xf32>, i32 -> vector<1x128xf32>
    %47 = arith.addf %45, %46 : vector<1x128xf32>
    %c64_i32_30 = arith.constant 64 : i32
    %48 = tpu.dynamic_rotate %47 by %c64_i32_30 dim 1 : vector<1x128xf32>, i32 -> vector<1x128xf32>
    %49 = arith.addf %47, %48 : vector<1x128xf32>
    %cst_31 = arith.constant 0.001953125 : f32
    %50 = vector.broadcast %cst_31 : f32 to vector<1x128xf32>
    %51 = arith.mulf %36, %50 : vector<1x128xf32>
    %cst_32 = arith.constant 0.001953125 : f32
    %52 = vector.broadcast %cst_32 : f32 to vector<1x128xf32>
    %53 = arith.mulf %49, %52 : vector<1x128xf32>
    %54 = arith.mulf %51, %51 : vector<1x128xf32>
    %55 = arith.subf %53, %54 : vector<1x128xf32>
    %c0_33 = arith.constant 0 : index
    %c0_34 = arith.constant 0 : index
    %56 = vector.load %arg2[%c0_33, %c0_34] : memref<4x128xf32, #tpu.memory_space<vmem>>, vector<1x128xf32>
    %cst_35 = arith.constant 9.99999974E-6 : f32
    %57 = vector.broadcast %cst_35 : f32 to vector<1x128xf32>
    %58 = arith.addf %55, %57 : vector<1x128xf32>
    %59 = math.rsqrt %58 : vector<1x128xf32>
    %60 = arith.mulf %56, %59 : vector<1x128xf32>
    %c0_36 = arith.constant 0 : index
    %c0_37 = arith.constant 0 : index
    %61 = vector.load %arg3[%c0_36, %c0_37] : memref<4x128xf32, #tpu.memory_space<vmem>>, vector<1x128xf32>
    %62 = arith.mulf %51, %60 : vector<1x128xf32>
    %63 = arith.subf %61, %62 : vector<1x128xf32>
    %64 = vector.broadcast %60 : vector<1x128xf32> to vector<16x128xf32>
    %65 = arith.mulf %24, %64 : vector<16x128xf32>
    %66 = vector.broadcast %63 : vector<1x128xf32> to vector<16x128xf32>
    %67 = arith.addf %65, %66 : vector<16x128xf32>
    %c1_38 = arith.constant 1 : index
    %c0_39 = arith.constant 0 : index
    %68 = vector.load %arg5[%c1_38, %c0_39] : memref<18x128xf32, #tpu.memory_space<vmem>>, vector<16x128xf32>
    tpu.vector_store %arg5[%c1_38, %c0_39], %67 {strides = array<i32>} : memref<18x128xf32, #tpu.memory_space<vmem>>, vector<16x128xf32>,
    %c0_40 = arith.constant 0 : index
    %c0_41 = arith.constant 0 : index
    %69 = vector.load %arg5[%c0_40, %c0_41] : memref<18x128xf32, #tpu.memory_space<vmem>>, vector<16x128xf32>
    %70 = arith.truncf %69 : vector<16x128xf32> to vector<16x128xbf16>
    %c3 = arith.constant 3 : index
    %c0_42 = arith.constant 0 : index
    %c0_43 = arith.constant 0 : index
    %71 = vector.load %arg1[%c3, %c0_42, %c0_43] : memref<12x128x128xbf16, #tpu.memory_space<vmem>>, vector<1x128x128xbf16>
    %72 = vector.shape_cast %71 : vector<1x128x128xbf16> to vector<128x128xbf16>
    %cst_44 = arith.constant dense<0.000000e+00> : vector<16x128xf32>
    %73 = tpu.matmul %70, %72, %cst_44 {dimension_numbers = #tpu.dot_dimension_numbers<[1], [0], [0], [1], [0, 0, 1, 1], [], []>} : vector<16x128xbf16>, vector<128x128xbf16>, vector<16x128xf32> -> vector<16x128xf32>
    %c1_45 = arith.constant 1 : index
    %c0_46 = arith.constant 0 : index
    %74 = vector.load %arg5[%c1_45, %c0_46] : memref<18x128xf32, #tpu.memory_space<vmem>>, vector<16x128xf32>
    %75 = arith.truncf %74 : vector<16x128xf32> to vector<16x128xbf16>
    %c4 = arith.constant 4 : index
    %c0_47 = arith.constant 0 : index
    %c0_48 = arith.constant 0 : index
    %76 = vector.load %arg1[%c4, %c0_47, %c0_48] : memref<12x128x128xbf16, #tpu.memory_space<vmem>>, vector<1x128x128xbf16>
    %77 = vector.shape_cast %76 : vector<1x128x128xbf16> to vector<128x128xbf16>
    %cst_49 = arith.constant dense<0.000000e+00> : vector<16x128xf32>
    %78 = tpu.matmul %75, %77, %cst_49 {dimension_numbers = #tpu.dot_dimension_numbers<[1], [0], [0], [1], [0, 0, 1, 1], [], []>} : vector<16x128xbf16>, vector<128x128xbf16>, vector<16x128xf32> -> vector<16x128xf32>
    %79 = arith.addf %73, %78 : vector<16x128xf32>
    %c2_50 = arith.constant 2 : index
    %c0_51 = arith.constant 0 : index
    %80 = vector.load %arg5[%c2_50, %c0_51] : memref<18x128xf32, #tpu.memory_space<vmem>>, vector<16x128xf32>
    %81 = arith.truncf %80 : vector<16x128xf32> to vector<16x128xbf16>
    %c5 = arith.constant 5 : index
    %c0_52 = arith.constant 0 : index
    %c0_53 = arith.constant 0 : index
    %82 = vector.load %arg1[%c5, %c0_52, %c0_53] : memref<12x128x128xbf16, #tpu.memory_space<vmem>>, vector<1x128x128xbf16>
    %83 = vector.shape_cast %82 : vector<1x128x128xbf16> to vector<128x128xbf16>
    %cst_54 = arith.constant dense<0.000000e+00> : vector<16x128xf32>
    %84 = tpu.matmul %81, %83, %cst_54 {dimension_numbers = #tpu.dot_dimension_numbers<[1], [0], [0], [1], [0, 0, 1, 1], [], []>} : vector<16x128xbf16>, vector<128x128xbf16>, vector<16x128xf32> -> vector<16x128xf32>
    %85 = arith.addf %79, %84 : vector<16x128xf32>
    %86 = arith.addf %4, %85 : vector<16x128xf32>
    %cst_55 = arith.constant 0.000000e+00 : f32
    %87 = vector.broadcast %cst_55 : f32 to vector<16x128xf32>
    %88 = arith.maximumf %86, %87 : vector<16x128xf32>
    %cst_56 = arith.constant dense<0.000000e+00> : vector<128xf32>
    %89 = vector.multi_reduction <add>, %88, %cst_56 [0] : vector<16x128xf32> to vector<128xf32>
    %90 = vector.shape_cast %89 : vector<128xf32> to vector<1x128xf32>
    %c4_i32_57 = arith.constant 4 : i32
    %91 = tpu.dynamic_rotate %90 by %c4_i32_57 dim 1 : vector<1x128xf32>, i32 -> vector<1x128xf32>
    %92 = arith.addf %90, %91 : vector<1x128xf32>
    %c8_i32_58 = arith.constant 8 : i32
    %93 = tpu.dynamic_rotate %92 by %c8_i32_58 dim 1 : vector<1x128xf32>, i32 -> vector<1x128xf32>
    %94 = arith.addf %92, %93 : vector<1x128xf32>
    %c16_i32_59 = arith.constant 16 : i32
    %95 = tpu.dynamic_rotate %94 by %c16_i32_59 dim 1 : vector<1x128xf32>, i32 -> vector<1x128xf32>
    %96 = arith.addf %94, %95 : vector<1x128xf32>
    %c32_i32_60 = arith.constant 32 : i32
    %97 = tpu.dynamic_rotate %96 by %c32_i32_60 dim 1 : vector<1x128xf32>, i32 -> vector<1x128xf32>
    %98 = arith.addf %96, %97 : vector<1x128xf32>
    %c64_i32_61 = arith.constant 64 : i32
    %99 = tpu.dynamic_rotate %98 by %c64_i32_61 dim 1 : vector<1x128xf32>, i32 -> vector<1x128xf32>
    %100 = arith.addf %98, %99 : vector<1x128xf32>
    %101 = arith.mulf %88, %88 : vector<16x128xf32>
    %cst_62 = arith.constant dense<0.000000e+00> : vector<128xf32>
    %102 = vector.multi_reduction <add>, %101, %cst_62 [0] : vector<16x128xf32> to vector<128xf32>
    %103 = vector.shape_cast %102 : vector<128xf32> to vector<1x128xf32>
    %c4_i32_63 = arith.constant 4 : i32
    %104 = tpu.dynamic_rotate %103 by %c4_i32_63 dim 1 : vector<1x128xf32>, i32 -> vector<1x128xf32>
    %105 = arith.addf %103, %104 : vector<1x128xf32>
    %c8_i32_64 = arith.constant 8 : i32
    %106 = tpu.dynamic_rotate %105 by %c8_i32_64 dim 1 : vector<1x128xf32>, i32 -> vector<1x128xf32>
    %107 = arith.addf %105, %106 : vector<1x128xf32>
    %c16_i32_65 = arith.constant 16 : i32
    %108 = tpu.dynamic_rotate %107 by %c16_i32_65 dim 1 : vector<1x128xf32>, i32 -> vector<1x128xf32>
    %109 = arith.addf %107, %108 : vector<1x128xf32>
    %c32_i32_66 = arith.constant 32 : i32
    %110 = tpu.dynamic_rotate %109 by %c32_i32_66 dim 1 : vector<1x128xf32>, i32 -> vector<1x128xf32>
    %111 = arith.addf %109, %110 : vector<1x128xf32>
    %c64_i32_67 = arith.constant 64 : i32
    %112 = tpu.dynamic_rotate %111 by %c64_i32_67 dim 1 : vector<1x128xf32>, i32 -> vector<1x128xf32>
    %113 = arith.addf %111, %112 : vector<1x128xf32>
    %cst_68 = arith.constant 0.001953125 : f32
    %114 = vector.broadcast %cst_68 : f32 to vector<1x128xf32>
    %115 = arith.mulf %100, %114 : vector<1x128xf32>
    %cst_69 = arith.constant 0.001953125 : f32
    %116 = vector.broadcast %cst_69 : f32 to vector<1x128xf32>
    %117 = arith.mulf %113, %116 : vector<1x128xf32>
    %118 = arith.mulf %115, %115 : vector<1x128xf32>
    %119 = arith.subf %117, %118 : vector<1x128xf32>
    %c1_70 = arith.constant 1 : index
    %c0_71 = arith.constant 0 : index
    %120 = vector.load %arg2[%c1_70, %c0_71] : memref<4x128xf32, #tpu.memory_space<vmem>>, vector<1x128xf32>
    %cst_72 = arith.constant 9.99999974E-6 : f32
    %121 = vector.broadcast %cst_72 : f32 to vector<1x128xf32>
    %122 = arith.addf %119, %121 : vector<1x128xf32>
    %123 = math.rsqrt %122 : vector<1x128xf32>
    %124 = arith.mulf %120, %123 : vector<1x128xf32>
    %c1_73 = arith.constant 1 : index
    %c0_74 = arith.constant 0 : index
    %125 = vector.load %arg3[%c1_73, %c0_74] : memref<4x128xf32, #tpu.memory_space<vmem>>, vector<1x128xf32>
    %126 = arith.mulf %115, %124 : vector<1x128xf32>
    %127 = arith.subf %125, %126 : vector<1x128xf32>
    %128 = vector.broadcast %124 : vector<1x128xf32> to vector<16x128xf32>
    %129 = arith.mulf %88, %128 : vector<16x128xf32>
    %130 = vector.broadcast %127 : vector<1x128xf32> to vector<16x128xf32>
    %131 = arith.addf %129, %130 : vector<16x128xf32>
    %c1_75 = arith.constant 1 : index
    %c0_76 = arith.constant 0 : index
    %132 = vector.load %arg5[%c1_75, %c0_76] : memref<18x128xf32, #tpu.memory_space<vmem>>, vector<16x128xf32>
    tpu.vector_store %arg5[%c1_75, %c0_76], %131 {strides = array<i32>} : memref<18x128xf32, #tpu.memory_space<vmem>>, vector<16x128xf32>,
    %c0_77 = arith.constant 0 : index
    %c0_78 = arith.constant 0 : index
    %133 = vector.load %arg5[%c0_77, %c0_78] : memref<18x128xf32, #tpu.memory_space<vmem>>, vector<16x128xf32>
    %134 = arith.truncf %133 : vector<16x128xf32> to vector<16x128xbf16>
    %c6 = arith.constant 6 : index
    %c0_79 = arith.constant 0 : index
    %c0_80 = arith.constant 0 : index
    %135 = vector.load %arg1[%c6, %c0_79, %c0_80] : memref<12x128x128xbf16, #tpu.memory_space<vmem>>, vector<1x128x128xbf16>
    %136 = vector.shape_cast %135 : vector<1x128x128xbf16> to vector<128x128xbf16>
    %cst_81 = arith.constant dense<0.000000e+00> : vector<16x128xf32>
    %137 = tpu.matmul %134, %136, %cst_81 {dimension_numbers = #tpu.dot_dimension_numbers<[1], [0], [0], [1], [0, 0, 1, 1], [], []>} : vector<16x128xbf16>, vector<128x128xbf16>, vector<16x128xf32> -> vector<16x128xf32>
    %c1_82 = arith.constant 1 : index
    %c0_83 = arith.constant 0 : index
    %138 = vector.load %arg5[%c1_82, %c0_83] : memref<18x128xf32, #tpu.memory_space<vmem>>, vector<16x128xf32>
    %139 = arith.truncf %138 : vector<16x128xf32> to vector<16x128xbf16>
    %c7 = arith.constant 7 : index
    %c0_84 = arith.constant 0 : index
    %c0_85 = arith.constant 0 : index
    %140 = vector.load %arg1[%c7, %c0_84, %c0_85] : memref<12x128x128xbf16, #tpu.memory_space<vmem>>, vector<1x128x128xbf16>
    %141 = vector.shape_cast %140 : vector<1x128x128xbf16> to vector<128x128xbf16>
    %cst_86 = arith.constant dense<0.000000e+00> : vector<16x128xf32>
    %142 = tpu.matmul %139, %141, %cst_86 {dimension_numbers = #tpu.dot_dimension_numbers<[1], [0], [0], [1], [0, 0, 1, 1], [], []>} : vector<16x128xbf16>, vector<128x128xbf16>, vector<16x128xf32> -> vector<16x128xf32>
    %143 = arith.addf %137, %142 : vector<16x128xf32>
    %c2_87 = arith.constant 2 : index
    %c0_88 = arith.constant 0 : index
    %144 = vector.load %arg5[%c2_87, %c0_88] : memref<18x128xf32, #tpu.memory_space<vmem>>, vector<16x128xf32>
    %145 = arith.truncf %144 : vector<16x128xf32> to vector<16x128xbf16>
    %c8 = arith.constant 8 : index
    %c0_89 = arith.constant 0 : index
    %c0_90 = arith.constant 0 : index
    %146 = vector.load %arg1[%c8, %c0_89, %c0_90] : memref<12x128x128xbf16, #tpu.memory_space<vmem>>, vector<1x128x128xbf16>
    %147 = vector.shape_cast %146 : vector<1x128x128xbf16> to vector<128x128xbf16>
    %cst_91 = arith.constant dense<0.000000e+00> : vector<16x128xf32>
    %148 = tpu.matmul %145, %147, %cst_91 {dimension_numbers = #tpu.dot_dimension_numbers<[1], [0], [0], [1], [0, 0, 1, 1], [], []>} : vector<16x128xbf16>, vector<128x128xbf16>, vector<16x128xf32> -> vector<16x128xf32>
    %149 = arith.addf %143, %148 : vector<16x128xf32>
    %cst_92 = arith.constant 0.000000e+00 : f32
    %150 = vector.broadcast %cst_92 : f32 to vector<16x128xf32>
    %151 = arith.maximumf %149, %150 : vector<16x128xf32>
    %cst_93 = arith.constant dense<0.000000e+00> : vector<128xf32>
    %152 = vector.multi_reduction <add>, %151, %cst_93 [0] : vector<16x128xf32> to vector<128xf32>
    %153 = vector.shape_cast %152 : vector<128xf32> to vector<1x128xf32>
    %c4_i32_94 = arith.constant 4 : i32
    %154 = tpu.dynamic_rotate %153 by %c4_i32_94 dim 1 : vector<1x128xf32>, i32 -> vector<1x128xf32>
    %155 = arith.addf %153, %154 : vector<1x128xf32>
    %c8_i32_95 = arith.constant 8 : i32
    %156 = tpu.dynamic_rotate %155 by %c8_i32_95 dim 1 : vector<1x128xf32>, i32 -> vector<1x128xf32>
    %157 = arith.addf %155, %156 : vector<1x128xf32>
    %c16_i32_96 = arith.constant 16 : i32
    %158 = tpu.dynamic_rotate %157 by %c16_i32_96 dim 1 : vector<1x128xf32>, i32 -> vector<1x128xf32>
    %159 = arith.addf %157, %158 : vector<1x128xf32>
    %c32_i32_97 = arith.constant 32 : i32
    %160 = tpu.dynamic_rotate %159 by %c32_i32_97 dim 1 : vector<1x128xf32>, i32 -> vector<1x128xf32>
    %161 = arith.addf %159, %160 : vector<1x128xf32>
    %c64_i32_98 = arith.constant 64 : i32
    %162 = tpu.dynamic_rotate %161 by %c64_i32_98 dim 1 : vector<1x128xf32>, i32 -> vector<1x128xf32>
    %163 = arith.addf %161, %162 : vector<1x128xf32>
    %164 = arith.mulf %151, %151 : vector<16x128xf32>
    %cst_99 = arith.constant dense<0.000000e+00> : vector<128xf32>
    %165 = vector.multi_reduction <add>, %164, %cst_99 [0] : vector<16x128xf32> to vector<128xf32>
    %166 = vector.shape_cast %165 : vector<128xf32> to vector<1x128xf32>
    %c4_i32_100 = arith.constant 4 : i32
    %167 = tpu.dynamic_rotate %166 by %c4_i32_100 dim 1 : vector<1x128xf32>, i32 -> vector<1x128xf32>
    %168 = arith.addf %166, %167 : vector<1x128xf32>
    %c8_i32_101 = arith.constant 8 : i32
    %169 = tpu.dynamic_rotate %168 by %c8_i32_101 dim 1 : vector<1x128xf32>, i32 -> vector<1x128xf32>
    %170 = arith.addf %168, %169 : vector<1x128xf32>
    %c16_i32_102 = arith.constant 16 : i32
    %171 = tpu.dynamic_rotate %170 by %c16_i32_102 dim 1 : vector<1x128xf32>, i32 -> vector<1x128xf32>
    %172 = arith.addf %170, %171 : vector<1x128xf32>
    %c32_i32_103 = arith.constant 32 : i32
    %173 = tpu.dynamic_rotate %172 by %c32_i32_103 dim 1 : vector<1x128xf32>, i32 -> vector<1x128xf32>
    %174 = arith.addf %172, %173 : vector<1x128xf32>
    %c64_i32_104 = arith.constant 64 : i32
    %175 = tpu.dynamic_rotate %174 by %c64_i32_104 dim 1 : vector<1x128xf32>, i32 -> vector<1x128xf32>
    %176 = arith.addf %174, %175 : vector<1x128xf32>
    %cst_105 = arith.constant 0.001953125 : f32
    %177 = vector.broadcast %cst_105 : f32 to vector<1x128xf32>
    %178 = arith.mulf %163, %177 : vector<1x128xf32>
    %cst_106 = arith.constant 0.001953125 : f32
    %179 = vector.broadcast %cst_106 : f32 to vector<1x128xf32>
    %180 = arith.mulf %176, %179 : vector<1x128xf32>
    %181 = arith.mulf %178, %178 : vector<1x128xf32>
    %182 = arith.subf %180, %181 : vector<1x128xf32>
    %c2_107 = arith.constant 2 : index
    %c0_108 = arith.constant 0 : index
    %183 = vector.load %arg2[%c2_107, %c0_108] : memref<4x128xf32, #tpu.memory_space<vmem>>, vector<1x128xf32>
    %cst_109 = arith.constant 9.99999974E-6 : f32
    %184 = vector.broadcast %cst_109 : f32 to vector<1x128xf32>
    %185 = arith.addf %182, %184 : vector<1x128xf32>
    %186 = math.rsqrt %185 : vector<1x128xf32>
    %187 = arith.mulf %183, %186 : vector<1x128xf32>
    %c2_110 = arith.constant 2 : index
    %c0_111 = arith.constant 0 : index
    %188 = vector.load %arg3[%c2_110, %c0_111] : memref<4x128xf32, #tpu.memory_space<vmem>>, vector<1x128xf32>
    %189 = arith.mulf %178, %187 : vector<1x128xf32>
    %190 = arith.subf %188, %189 : vector<1x128xf32>
    %191 = vector.broadcast %187 : vector<1x128xf32> to vector<16x128xf32>
    %192 = arith.mulf %151, %191 : vector<16x128xf32>
    %193 = vector.broadcast %190 : vector<1x128xf32> to vector<16x128xf32>
    %194 = arith.addf %192, %193 : vector<16x128xf32>
    %c1_112 = arith.constant 1 : index
    %c0_113 = arith.constant 0 : index
    %195 = vector.load %arg5[%c1_112, %c0_113] : memref<18x128xf32, #tpu.memory_space<vmem>>, vector<16x128xf32>
    tpu.vector_store %arg5[%c1_112, %c0_113], %194 {strides = array<i32>} : memref<18x128xf32, #tpu.memory_space<vmem>>, vector<16x128xf32>,
    %c0_114 = arith.constant 0 : index
    %c0_115 = arith.constant 0 : index
    %196 = vector.load %arg5[%c0_114, %c0_115] : memref<18x128xf32, #tpu.memory_space<vmem>>, vector<16x128xf32>
    %197 = arith.truncf %196 : vector<16x128xf32> to vector<16x128xbf16>
    %c9 = arith.constant 9 : index
    %c0_116 = arith.constant 0 : index
    %c0_117 = arith.constant 0 : index
    %198 = vector.load %arg1[%c9, %c0_116, %c0_117] : memref<12x128x128xbf16, #tpu.memory_space<vmem>>, vector<1x128x128xbf16>
    %199 = vector.shape_cast %198 : vector<1x128x128xbf16> to vector<128x128xbf16>
    %cst_118 = arith.constant dense<0.000000e+00> : vector<16x128xf32>
    %200 = tpu.matmul %197, %199, %cst_118 {dimension_numbers = #tpu.dot_dimension_numbers<[1], [0], [0], [1], [0, 0, 1, 1], [], []>} : vector<16x128xbf16>, vector<128x128xbf16>, vector<16x128xf32> -> vector<16x128xf32>
    %c1_119 = arith.constant 1 : index
    %c0_120 = arith.constant 0 : index
    %201 = vector.load %arg5[%c1_119, %c0_120] : memref<18x128xf32, #tpu.memory_space<vmem>>, vector<16x128xf32>
    %202 = arith.truncf %201 : vector<16x128xf32> to vector<16x128xbf16>
    %c10 = arith.constant 10 : index
    %c0_121 = arith.constant 0 : index
    %c0_122 = arith.constant 0 : index
    %203 = vector.load %arg1[%c10, %c0_121, %c0_122] : memref<12x128x128xbf16, #tpu.memory_space<vmem>>, vector<1x128x128xbf16>
    %204 = vector.shape_cast %203 : vector<1x128x128xbf16> to vector<128x128xbf16>
    %cst_123 = arith.constant dense<0.000000e+00> : vector<16x128xf32>
    %205 = tpu.matmul %202, %204, %cst_123 {dimension_numbers = #tpu.dot_dimension_numbers<[1], [0], [0], [1], [0, 0, 1, 1], [], []>} : vector<16x128xbf16>, vector<128x128xbf16>, vector<16x128xf32> -> vector<16x128xf32>
    %206 = arith.addf %200, %205 : vector<16x128xf32>
    %c2_124 = arith.constant 2 : index
    %c0_125 = arith.constant 0 : index
    %207 = vector.load %arg5[%c2_124, %c0_125] : memref<18x128xf32, #tpu.memory_space<vmem>>, vector<16x128xf32>
    %208 = arith.truncf %207 : vector<16x128xf32> to vector<16x128xbf16>
    %c11 = arith.constant 11 : index
    %c0_126 = arith.constant 0 : index
    %c0_127 = arith.constant 0 : index
    %209 = vector.load %arg1[%c11, %c0_126, %c0_127] : memref<12x128x128xbf16, #tpu.memory_space<vmem>>, vector<1x128x128xbf16>
    %210 = vector.shape_cast %209 : vector<1x128x128xbf16> to vector<128x128xbf16>
    %cst_128 = arith.constant dense<0.000000e+00> : vector<16x128xf32>
    %211 = tpu.matmul %208, %210, %cst_128 {dimension_numbers = #tpu.dot_dimension_numbers<[1], [0], [0], [1], [0, 0, 1, 1], [], []>} : vector<16x128xbf16>, vector<128x128xbf16>, vector<16x128xf32> -> vector<16x128xf32>
    %212 = arith.addf %206, %211 : vector<16x128xf32>
    %213 = arith.addf %131, %212 : vector<16x128xf32>
    %cst_129 = arith.constant 0.000000e+00 : f32
    %214 = vector.broadcast %cst_129 : f32 to vector<16x128xf32>
    %215 = arith.maximumf %213, %214 : vector<16x128xf32>
    %cst_130 = arith.constant dense<0.000000e+00> : vector<128xf32>
    %216 = vector.multi_reduction <add>, %215, %cst_130 [0] : vector<16x128xf32> to vector<128xf32>
    %217 = vector.shape_cast %216 : vector<128xf32> to vector<1x128xf32>
    %c4_i32_131 = arith.constant 4 : i32
    %218 = tpu.dynamic_rotate %217 by %c4_i32_131 dim 1 : vector<1x128xf32>, i32 -> vector<1x128xf32>
    %219 = arith.addf %217, %218 : vector<1x128xf32>
    %c8_i32_132 = arith.constant 8 : i32
    %220 = tpu.dynamic_rotate %219 by %c8_i32_132 dim 1 : vector<1x128xf32>, i32 -> vector<1x128xf32>
    %221 = arith.addf %219, %220 : vector<1x128xf32>
    %c16_i32_133 = arith.constant 16 : i32
    %222 = tpu.dynamic_rotate %221 by %c16_i32_133 dim 1 : vector<1x128xf32>, i32 -> vector<1x128xf32>
    %223 = arith.addf %221, %222 : vector<1x128xf32>
    %c32_i32_134 = arith.constant 32 : i32
    %224 = tpu.dynamic_rotate %223 by %c32_i32_134 dim 1 : vector<1x128xf32>, i32 -> vector<1x128xf32>
    %225 = arith.addf %223, %224 : vector<1x128xf32>
    %c64_i32_135 = arith.constant 64 : i32
    %226 = tpu.dynamic_rotate %225 by %c64_i32_135 dim 1 : vector<1x128xf32>, i32 -> vector<1x128xf32>
    %227 = arith.addf %225, %226 : vector<1x128xf32>
    %228 = arith.mulf %215, %215 : vector<16x128xf32>
    %cst_136 = arith.constant dense<0.000000e+00> : vector<128xf32>
    %229 = vector.multi_reduction <add>, %228, %cst_136 [0] : vector<16x128xf32> to vector<128xf32>
    %230 = vector.shape_cast %229 : vector<128xf32> to vector<1x128xf32>
    %c4_i32_137 = arith.constant 4 : i32
    %231 = tpu.dynamic_rotate %230 by %c4_i32_137 dim 1 : vector<1x128xf32>, i32 -> vector<1x128xf32>
    %232 = arith.addf %230, %231 : vector<1x128xf32>
    %c8_i32_138 = arith.constant 8 : i32
    %233 = tpu.dynamic_rotate %232 by %c8_i32_138 dim 1 : vector<1x128xf32>, i32 -> vector<1x128xf32>
    %234 = arith.addf %232, %233 : vector<1x128xf32>
    %c16_i32_139 = arith.constant 16 : i32
    %235 = tpu.dynamic_rotate %234 by %c16_i32_139 dim 1 : vector<1x128xf32>, i32 -> vector<1x128xf32>
    %236 = arith.addf %234, %235 : vector<1x128xf32>
    %c32_i32_140 = arith.constant 32 : i32
    %237 = tpu.dynamic_rotate %236 by %c32_i32_140 dim 1 : vector<1x128xf32>, i32 -> vector<1x128xf32>
    %238 = arith.addf %236, %237 : vector<1x128xf32>
    %c64_i32_141 = arith.constant 64 : i32
    %239 = tpu.dynamic_rotate %238 by %c64_i32_141 dim 1 : vector<1x128xf32>, i32 -> vector<1x128xf32>
    %240 = arith.addf %238, %239 : vector<1x128xf32>
    %cst_142 = arith.constant 0.001953125 : f32
    %241 = vector.broadcast %cst_142 : f32 to vector<1x128xf32>
    %242 = arith.mulf %227, %241 : vector<1x128xf32>
    %cst_143 = arith.constant 0.001953125 : f32
    %243 = vector.broadcast %cst_143 : f32 to vector<1x128xf32>
    %244 = arith.mulf %240, %243 : vector<1x128xf32>
    %245 = arith.mulf %242, %242 : vector<1x128xf32>
    %246 = arith.subf %244, %245 : vector<1x128xf32>
    %c3_144 = arith.constant 3 : index
    %c0_145 = arith.constant 0 : index
    %247 = vector.load %arg2[%c3_144, %c0_145] : memref<4x128xf32, #tpu.memory_space<vmem>>, vector<1x128xf32>
    %cst_146 = arith.constant 9.99999974E-6 : f32
    %248 = vector.broadcast %cst_146 : f32 to vector<1x128xf32>
    %249 = arith.addf %246, %248 : vector<1x128xf32>
    %250 = math.rsqrt %249 : vector<1x128xf32>
    %251 = arith.mulf %247, %250 : vector<1x128xf32>
    %c3_147 = arith.constant 3 : index
    %c0_148 = arith.constant 0 : index
    %252 = vector.load %arg3[%c3_147, %c0_148] : memref<4x128xf32, #tpu.memory_space<vmem>>, vector<1x128xf32>
    %253 = arith.mulf %242, %251 : vector<1x128xf32>
    %254 = arith.subf %252, %253 : vector<1x128xf32>
    %255 = vector.broadcast %251 : vector<1x128xf32> to vector<16x128xf32>
    %256 = arith.mulf %215, %255 : vector<16x128xf32>
    %257 = vector.broadcast %254 : vector<1x128xf32> to vector<16x128xf32>
    %258 = arith.addf %256, %257 : vector<16x128xf32>
    %c0_149 = arith.constant 0 : index
    %c0_150 = arith.constant 0 : index
    %259 = vector.load %arg4[%c0_149, %c0_150] : memref<16x128xf32, #tpu.memory_space<vmem>>, vector<16x128xf32>
    tpu.vector_store %arg4[%c0_149, %c0_150], %258 {strides = array<i32>} : memref<16x128xf32, #tpu.memory_space<vmem>>, vector<16x128xf32>,
    return
  }
}

</mosaic_0001>

<llo_original>
// kernel: tpu_custom_call.1
$region0: #{tpu_custom_call.1}
  #allocation0 [shape = 'u32[]', space=smem, size = 0x4, offset = 0x4, fixed_abs, tag = 'smem constant byte address 0x4 - core index']
  #allocation1 [shape = 'u32[144,128]{1,0:T(1,128)}', space=vmem, size = 0x12000, scoped, tag = 'internal scratch']
  #allocation2 [shape = 'f32[18,128]{1,0:T(8,128)}', space=vmem, size = 0x3000, scoped, tag = 'scratch operand']
  %s0 = inlined_call_operand.hbm [shape: f32[16,128], index: 0, kind: input, shape index: {}]
  %s1 = inlined_call_operand.hbm [shape: bf16[12,128,128], index: 1, kind: input, shape index: {}]
  %s2 = inlined_call_operand.vmem [shape: f32[4,128], index: 2, kind: input, shape index: {}]
  %s3 = inlined_call_operand.vmem [shape: f32[4,128], index: 3, kind: input, shape index: {}]
  %s4 = inlined_call_operand.hbm [shape: f32[16,128], index: 4, kind: output, shape index: {}]
  %s5 = sld [smem:[#allocation0]]
  $region34: #{tpu_custom_call.1} parent=0
    _
  %s7 = ssub.s32 1, %s5
  %s8 = scalar_select 0, %s7, %s5
  $region1: #{tpu_custom_call.1} parent=0
    #allocation3 [shape = 'u8[8192]{0}', space=vmem, size = 0x2000, scoped, tag = 'input window, operand 0, single buffered']
    #allocation4 [shape = 's32[1]{0}', space=sflag, size = 0x4, scoped, tag = 'scoped memory for tpu_custom_call.1']
    #allocation5 [shape = 's32[1]{0}', space=sflag, size = 0x4, scoped, tag = 'scoped memory for tpu_custom_call.1']
    #allocation6 [shape = 'u8[393216]{0}', space=vmem, size = 0x60000, scoped, tag = 'input window, operand 1, single buffered']
    #allocation7 [shape = 's32[1]{0}', space=sflag, size = 0x4, scoped, tag = 'scoped memory for tpu_custom_call.1']
    #allocation8 [shape = 'u8[8192]{0}', space=vmem, size = 0x2000, scoped, tag = 'output window, operand 0, single buffered']
    %9 = vsyncpa [#allocation4], 0
    %10 = vsyncpa [#allocation7], 0
    %11 = vsyncpa [#allocation5], 0
    // Predicated region
    $region2: #{tpu_custom_call.1} parent=1 // pred_check
      _
    $region3: #{tpu_custom_call.1} parent=1 // pred_check_branch
      %13 = sbr.rel (0) target = $region5
    $region4: #{tpu_custom_call.1} parent=1 // pred_region
      %s15 = ssub.s32 256, 256
      %16 = vsyncadd [#allocation4], %s15
      %s17 = sshll.u32 [#allocation3], 4
      %s18 = int_to_ptr.vmem [resolvable:$true] %s17
      %23 = dma.hbm_to_vmem [thread:$0]  %s0, 256, %s18, [#allocation4], 128, 128, 8
    $region5: #{tpu_custom_call.1} parent=1 // pred_fallthru
      _
    // Predicated region
    $region6: #{tpu_custom_call.1} parent=1 // pred_check
      _
    $region7: #{tpu_custom_call.1} parent=1 // pred_check_branch
      %25 = sbr.rel (0) target = $region9
    $region8: #{tpu_custom_call.1} parent=1 // pred_region
      %s27 = ssub.s32 12288, 12288
      %28 = vsyncadd [#allocation7], %s27
      %s29 = sshll.u32 [#allocation6], 4
      %s30 = int_to_ptr.vmem [resolvable:$true] %s29
      %35 = dma.hbm_to_vmem [thread:$0]  %s1, 12288, %s30, [#allocation7], 64, 64, 4
    $region9: #{tpu_custom_call.1} parent=1 // pred_fallthru
      _
    // Predicated region
    $region10: #{tpu_custom_call.1} parent=1 // pred_check
      _
    $region11: #{tpu_custom_call.1} parent=1 // pred_check_branch
      %37 = sbr.rel (0) target = $region13
    $region12: #{tpu_custom_call.1} parent=1 // pred_region
      _
    $region13: #{tpu_custom_call.1} parent=1 // pred_fallthru
      _
    // Predicated region
    $region14: #{tpu_custom_call.1} parent=1 // pred_check
      _
    $region15: #{tpu_custom_call.1} parent=1 // pred_check_branch
      %39 = sbr.rel (0) target = $region17
    $region16: #{tpu_custom_call.1} parent=1 // pred_region
      _
    $region17: #{tpu_custom_call.1} parent=1 // pred_fallthru
      _
    // Predicated region
    $region18: #{tpu_custom_call.1} parent=1 // pred_check
      _
    $region19: #{tpu_custom_call.1} parent=1 // pred_check_branch
      %41 = sbr.rel (0) target = $region21
    $region20: #{tpu_custom_call.1} parent=1 // pred_region
      %42 = dma.done [#allocation4], 256
    $region21: #{tpu_custom_call.1} parent=1 // pred_fallthru
      _
    // Predicated region
    $region22: #{tpu_custom_call.1} parent=1 // pred_check
      _
    $region23: #{tpu_custom_call.1} parent=1 // pred_check_branch
      %44 = sbr.rel (0) target = $region25
    $region24: #{tpu_custom_call.1} parent=1 // pred_region
      %45 = dma.done [#allocation7], 12288
    $region25: #{tpu_custom_call.1} parent=1 // pred_fallthru
      _
    %47 = vst [vmem:[#allocation2] sm:$0x1] 0.0
    %48 = vst [vmem:[#allocation2 + $0x11] sm:$0x1] 0.0
    %v49 = vld [vmem:[#allocation3] sm:$0xff]
    %v50 = vld [vmem:[#allocation3 + $0x8] sm:$0xff]
    %51 = vst [vmem:[#allocation2 + $0x1] sm:$0xff] %v49
    %52 = vst [vmem:[#allocation2 + $0x9] sm:$0xff] %v50
    %v53 = vld [vmem:[#allocation2] sm:$0xff]
    %v54 = vld [vmem:[#allocation2 + $0x8] sm:$0xff]
    %v55 = vpack.c.bf16 %v54, %v53
    %v56 = vld [vmem:[#allocation6] sm:$0xf]
    %v57 = vld [vmem:[#allocation6 + $0x4] sm:$0xf]
    %v58 = vld [vmem:[#allocation6 + $0x8] sm:$0xf]
    %v59 = vld [vmem:[#allocation6 + $0xc] sm:$0xf]
    %v60 = vld [vmem:[#allocation6 + $0x10] sm:$0xf]
    %v61 = vld [vmem:[#allocation6 + $0x14] sm:$0xf]
    %v62 = vld [vmem:[#allocation6 + $0x18] sm:$0xf]
    %v63 = vld [vmem:[#allocation6 + $0x1c] sm:$0xf]
    %v64 = vld [vmem:[#allocation6 + $0x20] sm:$0xf]
    %v65 = vld [vmem:[#allocation6 + $0x24] sm:$0xf]
    %v66 = vld [vmem:[#allocation6 + $0x28] sm:$0xf]
    %v67 = vld [vmem:[#allocation6 + $0x2c] sm:$0xf]
    %v68 = vld [vmem:[#allocation6 + $0x30] sm:$0xf]
    %v69 = vld [vmem:[#allocation6 + $0x34] sm:$0xf]
    %v70 = vld [vmem:[#allocation6 + $0x38] sm:$0xf]
    %v71 = vld [vmem:[#allocation6 + $0x3c] sm:$0xf]
    %v72 = vld [vmem:[#allocation2 + $0x1] sm:$0xff]
    %v73 = vld [vmem:[#allocation2 + $0x9] sm:$0xff]
    %v74 = vpack.c.bf16 %v73, %v72
    %s75 = scalar_lea.vmem [#allocation6], 64
    %v76 = vld [vmem:[%s75] sm:$0xf]
    %v77 = vld [vmem:[%s75 + $0x4] sm:$0xf]
    %v78 = vld [vmem:[%s75 + $0x8] sm:$0xf]
    %v79 = vld [vmem:[%s75 + $0xc] sm:$0xf]
    %v80 = vld [vmem:[%s75 + $0x10] sm:$0xf]
    %v81 = vld [vmem:[%s75 + $0x14] sm:$0xf]
    %v82 = vld [vmem:[%s75 + $0x18] sm:$0xf]
    %v83 = vld [vmem:[%s75 + $0x1c] sm:$0xf]
    %v84 = vld [vmem:[%s75 + $0x20] sm:$0xf]
    %v85 = vld [vmem:[%s75 + $0x24] sm:$0xf]
    %v86 = vld [vmem:[%s75 + $0x28] sm:$0xf]
    %v87 = vld [vmem:[%s75 + $0x2c] sm:$0xf]
    %v88 = vld [vmem:[%s75 + $0x30] sm:$0xf]
    %v89 = vld [vmem:[%s75 + $0x34] sm:$0xf]
    %v90 = vld [vmem:[%s75 + $0x38] sm:$0xf]
    %v91 = vld [vmem:[%s75 + $0x3c] sm:$0xf]
    %v108 = vunpack.c.l.b16 %v76
    %v109 = vunpack.c.l.b16 %v77
    %v110 = vunpack.c.l.b16 %v78
    %v111 = vunpack.c.l.b16 %v79
    %v112 = vunpack.c.l.b16 %v80
    %v113 = vunpack.c.l.b16 %v81
    %v114 = vunpack.c.l.b16 %v82
    %v115 = vunpack.c.l.b16 %v83
    %v116 = vunpack.c.l.b16 %v84
    %v117 = vunpack.c.l.b16 %v85
    %v118 = vunpack.c.l.b16 %v86
    %v119 = vunpack.c.l.b16 %v87
    %v120 = vunpack.c.l.b16 %v88
    %v121 = vunpack.c.l.b16 %v89
    %v122 = vunpack.c.l.b16 %v90
    %v123 = vunpack.c.l.b16 %v91
    %v124 = vpack.c.b16 %v109, %v108
    %v125 = vpack.c.b16 %v111, %v110
    %v126 = vpack.c.b16 %v113, %v112
    %v127 = vpack.c.b16 %v115, %v114
    %v128 = vpack.c.b16 %v117, %v116
    %v129 = vpack.c.b16 %v119, %v118
    %v130 = vpack.c.b16 %v121, %v120
    %v131 = vpack.c.b16 %v123, %v122
    %140 = vmatprep.subr.bf16.mxu0 0
    %141 = vmatpush1.bf16.msra.mxu0 %v124
    %142 = vmatprep.subr.bf16.mxu0 0
    %143 = vmatpush1.bf16.msra.mxu0 %v125
    %144 = vmatprep.subr.bf16.mxu0 0
    %145 = vmatpush1.bf16.msra.mxu0 %v126
    %146 = vmatprep.subr.bf16.mxu0 0
    %147 = vmatpush1.bf16.msra.mxu0 %v127
    %148 = vmatprep.subr.bf16.mxu0 0
    %149 = vmatpush1.bf16.msra.mxu0 %v128
    %150 = vmatprep.subr.bf16.mxu0 0
    %151 = vmatpush1.bf16.msra.mxu0 %v129
    %152 = vmatprep.subr.bf16.mxu0 0
    %153 = vmatpush1.bf16.msra.mxu0 %v130
    %154 = vmatprep.subr.bf16.mxu0 0
    %155 = vmatpush1.bf16.msra.mxu0 %v131
    %156 = vmatprep.subr.bf16.mxu0 0
    %157 = vmatpush1.bf16.msra.mxu0 0
    %158 = vmatprep.subr.bf16.mxu0 0
    %159 = vmatpush1.bf16.msra.mxu0 0
    %160 = vmatprep.subr.bf16.mxu0 0
    %161 = vmatpush1.bf16.msra.mxu0 0
    %162 = vmatprep.subr.bf16.mxu0 0
    %163 = vmatpush1.bf16.msra.mxu0 0
    %164 = vmatprep.subr.bf16.mxu0 0
    %165 = vmatpush1.bf16.msra.mxu0 0
    %166 = vmatprep.subr.bf16.mxu0 0
    %167 = vmatpush1.bf16.msra.mxu0 0
    %168 = vmatprep.subr.bf16.mxu0 0
    %169 = vmatpush1.bf16.msra.mxu0 0
    %170 = vmatprep.subr.bf16.mxu0 0
    %171 = vmatpush1.bf16.msra.mxu0 0
    %172 = vmatprep.mubr.bf16.mxu0 0
    %173 = vmatmul.mubr.bf16.gmra.mrb[0].mxu0 %v74
    %v174 = vpop.f32.mrb[0].mxu0
    %v175 = vadd.f32 0.0, %v174
    %v176 = vpop.f32.mrb[0].mxu0
    %v177 = vpop.f32.mrb[0].mxu0
    %v178 = vadd.f32 0.0, %v177
    %v179 = vpop.f32.mrb[0].mxu0
    %180 = vdwg.mxu0
    %v197 = vunpack.c.l.b16 %v56
    %v198 = vunpack.c.l.b16 %v57
    %v199 = vunpack.c.l.b16 %v58
    %v200 = vunpack.c.l.b16 %v59
    %v201 = vunpack.c.l.b16 %v60
    %v202 = vunpack.c.l.b16 %v61
    %v203 = vunpack.c.l.b16 %v62
    %v204 = vunpack.c.l.b16 %v63
    %v205 = vunpack.c.l.b16 %v64
    %v206 = vunpack.c.l.b16 %v65
    %v207 = vunpack.c.l.b16 %v66
    %v208 = vunpack.c.l.b16 %v67
    %v209 = vunpack.c.l.b16 %v68
    %v210 = vunpack.c.l.b16 %v69
    %v211 = vunpack.c.l.b16 %v70
    %v212 = vunpack.c.l.b16 %v71
    %v213 = vpack.c.b16 %v198, %v197
    %v214 = vpack.c.b16 %v200, %v199
    %v215 = vpack.c.b16 %v202, %v201
    %v216 = vpack.c.b16 %v204, %v203
    %v217 = vpack.c.b16 %v206, %v205
    %v218 = vpack.c.b16 %v208, %v207
    %v219 = vpack.c.b16 %v210, %v209
    %v220 = vpack.c.b16 %v212, %v211
    %229 = vmatprep.subr.bf16.mxu0 0
    %230 = vmatpush1.bf16.msra.mxu0 %v213
    %231 = vmatprep.subr.bf16.mxu0 0
    %232 = vmatpush1.bf16.msra.mxu0 %v214
    %233 = vmatprep.subr.bf16.mxu0 0
    %234 = vmatpush1.bf16.msra.mxu0 %v215
    %235 = vmatprep.subr.bf16.mxu0 0
    %236 = vmatpush1.bf16.msra.mxu0 %v216
    %237 = vmatprep.subr.bf16.mxu0 0
    %238 = vmatpush1.bf16.msra.mxu0 %v217
    %239 = vmatprep.subr.bf16.mxu0 0
    %240 = vmatpush1.bf16.msra.mxu0 %v218
    %241 = vmatprep.subr.bf16.mxu0 0
    %242 = vmatpush1.bf16.msra.mxu0 %v219
    %243 = vmatprep.subr.bf16.mxu0 0
    %244 = vmatpush1.bf16.msra.mxu0 %v220
    %245 = vmatprep.subr.bf16.mxu0 0
    %246 = vmatpush1.bf16.msra.mxu0 0
    %247 = vmatprep.subr.bf16.mxu0 0
    %248 = vmatpush1.bf16.msra.mxu0 0
    %249 = vmatprep.subr.bf16.mxu0 0
    %250 = vmatpush1.bf16.msra.mxu0 0
    %251 = vmatprep.subr.bf16.mxu0 0
    %252 = vmatpush1.bf16.msra.mxu0 0
    %253 = vmatprep.subr.bf16.mxu0 0
    %254 = vmatpush1.bf16.msra.mxu0 0
    %255 = vmatprep.subr.bf16.mxu0 0
    %256 = vmatpush1.bf16.msra.mxu0 0
    %257 = vmatprep.subr.bf16.mxu0 0
    %258 = vmatpush1.bf16.msra.mxu0 0
    %259 = vmatprep.subr.bf16.mxu0 0
    %260 = vmatpush1.bf16.msra.mxu0 0
    %261 = vmatprep.mubr.bf16.mxu0 0
    %262 = vmatmul.mubr.bf16.gmra.mrb[0].mxu0 %v55
    %v263 = vpop.f32.mrb[0].mxu0
    %v264 = vadd.f32 %v175, %v263
    %v265 = vpop.f32.mrb[0].mxu0
    %v266 = vpop.f32.mrb[0].mxu0
    %v267 = vadd.f32 %v178, %v266
    %v268 = vpop.f32.mrb[0].mxu0
    %269 = vdwg.mxu0
    %v270 = vld [vmem:[#allocation2 + $0x2] sm:$0xff]
    %v271 = vld [vmem:[#allocation2 + $0xa] sm:$0xff]
    %v272 = vpack.c.bf16 %v271, %v270
    %s273 = scalar_lea.vmem [#allocation6], 128
    %v274 = vld [vmem:[%s273] sm:$0xf]
    %v275 = vld [vmem:[%s273 + $0x4] sm:$0xf]
    %v276 = vld [vmem:[%s273 + $0x8] sm:$0xf]
    %v277 = vld [vmem:[%s273 + $0xc] sm:$0xf]
    %v278 = vld [vmem:[%s273 + $0x10] sm:$0xf]
    %v279 = vld [vmem:[%s273 + $0x14] sm:$0xf]
    %v280 = vld [vmem:[%s273 + $0x18] sm:$0xf]
    %v281 = vld [vmem:[%s273 + $0x1c] sm:$0xf]
    %v282 = vld [vmem:[%s273 + $0x20] sm:$0xf]
    %v283 = vld [vmem:[%s273 + $0x24] sm:$0xf]
    %v284 = vld [vmem:[%s273 + $0x28] sm:$0xf]
    %v285 = vld [vmem:[%s273 + $0x2c] sm:$0xf]
    %v286 = vld [vmem:[%s273 + $0x30] sm:$0xf]
    %v287 = vld [vmem:[%s273 + $0x34] sm:$0xf]
    %v288 = vld [vmem:[%s273 + $0x38] sm:$0xf]
    %v289 = vld [vmem:[%s273 + $0x3c] sm:$0xf]
    %v306 = vunpack.c.l.b16 %v274
    %v307 = vunpack.c.l.b16 %v275
    %v308 = vunpack.c.l.b16 %v276
    %v309 = vunpack.c.l.b16 %v277
    %v310 = vunpack.c.l.b16 %v278
    %v311 = vunpack.c.l.b16 %v279
    %v312 = vunpack.c.l.b16 %v280
    %v313 = vunpack.c.l.b16 %v281
    %v314 = vunpack.c.l.b16 %v282
    %v315 = vunpack.c.l.b16 %v283
    %v316 = vunpack.c.l.b16 %v284
    %v317 = vunpack.c.l.b16 %v285
    %v318 = vunpack.c.l.b16 %v286
    %v319 = vunpack.c.l.b16 %v287
    %v320 = vunpack.c.l.b16 %v288
    %v321 = vunpack.c.l.b16 %v289
    %v322 = vpack.c.b16 %v307, %v306
    %v323 = vpack.c.b16 %v309, %v308
    %v324 = vpack.c.b16 %v311, %v310
    %v325 = vpack.c.b16 %v313, %v312
    %v326 = vpack.c.b16 %v315, %v314
    %v327 = vpack.c.b16 %v317, %v316
    %v328 = vpack.c.b16 %v319, %v318
    %v329 = vpack.c.b16 %v321, %v320
    %338 = vmatprep.subr.bf16.mxu0 0
    %339 = vmatpush1.bf16.msra.mxu0 %v322
    %340 = vmatprep.subr.bf16.mxu0 0
    %341 = vmatpush1.bf16.msra.mxu0 %v323
    %342 = vmatprep.subr.bf16.mxu0 0
    %343 = vmatpush1.bf16.msra.mxu0 %v324
    %344 = vmatprep.subr.bf16.mxu0 0
    %345 = vmatpush1.bf16.msra.mxu0 %v325
    %346 = vmatprep.subr.bf16.mxu0 0
    %347 = vmatpush1.bf16.msra.mxu0 %v326
    %348 = vmatprep.subr.bf16.mxu0 0
    %349 = vmatpush1.bf16.msra.mxu0 %v327
    %350 = vmatprep.subr.bf16.mxu0 0
    %351 = vmatpush1.bf16.msra.mxu0 %v328
    %352 = vmatprep.subr.bf16.mxu0 0
    %353 = vmatpush1.bf16.msra.mxu0 %v329
    %354 = vmatprep.subr.bf16.mxu0 0
    %355 = vmatpush1.bf16.msra.mxu0 0
    %356 = vmatprep.subr.bf16.mxu0 0
    %357 = vmatpush1.bf16.msra.mxu0 0
    %358 = vmatprep.subr.bf16.mxu0 0
    %359 = vmatpush1.bf16.msra.mxu0 0
    %360 = vmatprep.subr.bf16.mxu0 0
    %361 = vmatpush1.bf16.msra.mxu0 0
    %362 = vmatprep.subr.bf16.mxu0 0
    %363 = vmatpush1.bf16.msra.mxu0 0
    %364 = vmatprep.subr.bf16.mxu0 0
    %365 = vmatpush1.bf16.msra.mxu0 0
    %366 = vmatprep.subr.bf16.mxu0 0
    %367 = vmatpush1.bf16.msra.mxu0 0
    %368 = vmatprep.subr.bf16.mxu0 0
    %369 = vmatpush1.bf16.msra.mxu0 0
    %370 = vmatprep.mubr.bf16.mxu0 0
    %371 = vmatmul.mubr.bf16.gmra.mrb[0].mxu0 %v272
    %v372 = vpop.f32.mrb[0].mxu0
    %v373 = vadd.f32 0.0, %v372
    %v374 = vpop.f32.mrb[0].mxu0
    %v375 = vpop.f32.mrb[0].mxu0
    %v376 = vadd.f32 0.0, %v375
    %v377 = vpop.f32.mrb[0].mxu0
    %378 = vdwg.mxu0
    %v379 = vadd.f32 %v264, %v373
    %v380 = vadd.f32 %v267, %v376
    %v381 = vmax.f32 %v379, 0.0
    %v382 = vmax.f32 %v380, 0.0
    %v383 = vadd.f32 %v381, %v382
    %v384 = vrot.slane %v383, 4
    %v385 = vadd.f32 %v383, %v384
    %v386 = vrot.slane %v385, 2
    %v387 = vadd.f32 %v385, %v386
    %v388 = vrot.slane %v387, 1
    %v389 = vadd.f32 %v387, %v388
    %390 = vrot.lane.b32.xlu0 %v389, 4
    %v391 = vpop.permute.xlu0 %390
    %v392 = vadd.f32 %v389, %v391
    %393 = vrot.lane.b32.xlu0 %v392, 8
    %v394 = vpop.permute.xlu0 %393
    %v395 = vadd.f32 %v392, %v394
    %396 = vrot.lane.b32.xlu0 %v395, 16
    %v397 = vpop.permute.xlu0 %396
    %v398 = vadd.f32 %v395, %v397
    %399 = vrot.lane.b32.xlu0 %v398, 32
    %v400 = vpop.permute.xlu0 %399
    %v401 = vadd.f32 %v398, %v400
    %402 = vrot.lane.b32.xlu0 %v401, 64
    %v403 = vpop.permute.xlu0 %402
    %v404 = vadd.f32 %v401, %v403
    %v405 = vmul.f32 %v381, %v381
    %v406 = vmul.f32 %v382, %v382
    %v407 = vadd.f32 %v405, %v406
    %v408 = vrot.slane %v407, 4
    %v409 = vadd.f32 %v407, %v408
    %v410 = vrot.slane %v409, 2
    %v411 = vadd.f32 %v409, %v410
    %v412 = vrot.slane %v411, 1
    %v413 = vadd.f32 %v411, %v412
    %414 = vrot.lane.b32.xlu0 %v413, 4
    %v415 = vpop.permute.xlu0 %414
    %v416 = vadd.f32 %v413, %v415
    %417 = vrot.lane.b32.xlu0 %v416, 8
    %v418 = vpop.permute.xlu0 %417
    %v419 = vadd.f32 %v416, %v418
    %420 = vrot.lane.b32.xlu0 %v419, 16
    %v421 = vpop.permute.xlu0 %420
    %v422 = vadd.f32 %v419, %v421
    %423 = vrot.lane.b32.xlu0 %v422, 32
    %v424 = vpop.permute.xlu0 %423
    %v425 = vadd.f32 %v422, %v424
    %426 = vrot.lane.b32.xlu0 %v425, 64
    %v427 = vpop.permute.xlu0 %426
    %v428 = vadd.f32 %v425, %v427
    %v429 = vmul.f32 %v404, 0.001953125
    %v430 = vmul.f32 %v428, 0.001953125
    %v431 = vmul.f32 %v429, %v429
    %v432 = vsub.f32 %v430, %v431
    %v433 = vld [vmem:[%s2] sm:$0x1]
    %v434 = vadd.f32 %v432, 1e-05
    %v435 = vrsqrt.pop %v434
    %v436 = vmul.f32 %v433, %v435
    %v437 = vld [vmem:[%s3] sm:$0x1]
    %v438 = vmul.f32 %v429, %v436
    %v439 = vsub.f32 %v437, %v438
    %v440 = vlaneseq
    %v441 = vshrl.u32 %v440, 7
    %v442 = vsub.s32 0, %v441
    %v443 = vrot.slane %v436, %v442
    %v444 = vmul.f32 %v381, %v443
    %v445 = vmul.f32 %v382, %v443
    %v446 = vlaneseq
    %v447 = vshrl.u32 %v446, 7
    %v448 = vsub.s32 0, %v447
    %v449 = vrot.slane %v439, %v448
    %v450 = vadd.f32 %v444, %v449
    %v451 = vadd.f32 %v445, %v449
    %452 = vst [vmem:[#allocation2 + $0x1] sm:$0xff] %v450
    %453 = vst [vmem:[#allocation2 + $0x9] sm:$0xff] %v451
    %v454 = vld [vmem:[#allocation2] sm:$0xff]
    %v455 = vld [vmem:[#allocation2 + $0x8] sm:$0xff]
    %v456 = vpack.c.bf16 %v455, %v454
    %s457 = scalar_lea.vmem [#allocation6], 192
    %v458 = vld [vmem:[%s457] sm:$0xf]
    %v459 = vld [vmem:[%s457 + $0x4] sm:$0xf]
    %v460 = vld [vmem:[%s457 + $0x8] sm:$0xf]
    %v461 = vld [vmem:[%s457 + $0xc] sm:$0xf]
    %v462 = vld [vmem:[%s457 + $0x10] sm:$0xf]
    %v463 = vld [vmem:[%s457 + $0x14] sm:$0xf]
    %v464 = vld [vmem:[%s457 + $0x18] sm:$0xf]
    %v465 = vld [vmem:[%s457 + $0x1c] sm:$0xf]
    %v466 = vld [vmem:[%s457 + $0x20] sm:$0xf]
    %v467 = vld [vmem:[%s457 + $0x24] sm:$0xf]
    %v468 = vld [vmem:[%s457 + $0x28] sm:$0xf]
    %v469 = vld [vmem:[%s457 + $0x2c] sm:$0xf]
    %v470 = vld [vmem:[%s457 + $0x30] sm:$0xf]
    %v471 = vld [vmem:[%s457 + $0x34] sm:$0xf]
    %v472 = vld [vmem:[%s457 + $0x38] sm:$0xf]
    %v473 = vld [vmem:[%s457 + $0x3c] sm:$0xf]
    %v474 = vld [vmem:[#allocation2 + $0x1] sm:$0xff]
    %v475 = vld [vmem:[#allocation2 + $0x9] sm:$0xff]
    %v476 = vpack.c.bf16 %v475, %v474
    %s477 = scalar_lea.vmem [#allocation6], 256
    %v478 = vld [vmem:[%s477] sm:$0xf]
    %v479 = vld [vmem:[%s477 + $0x4] sm:$0xf]
    %v480 = vld [vmem:[%s477 + $0x8] sm:$0xf]
    %v481 = vld [vmem:[%s477 + $0xc] sm:$0xf]
    %v482 = vld [vmem:[%s477 + $0x10] sm:$0xf]
    %v483 = vld [vmem:[%s477 + $0x14] sm:$0xf]
    %v484 = vld [vmem:[%s477 + $0x18] sm:$0xf]
    %v485 = vld [vmem:[%s477 + $0x1c] sm:$0xf]
    %v486 = vld [vmem:[%s477 + $0x20] sm:$0xf]
    %v487 = vld [vmem:[%s477 + $0x24] sm:$0xf]
    %v488 = vld [vmem:[%s477 + $0x28] sm:$0xf]
    %v489 = vld [vmem:[%s477 + $0x2c] sm:$0xf]
    %v490 = vld [vmem:[%s477 + $0x30] sm:$0xf]
    %v491 = vld [vmem:[%s477 + $0x34] sm:$0xf]
    %v492 = vld [vmem:[%s477 + $0x38] sm:$0xf]
    %v493 = vld [vmem:[%s477 + $0x3c] sm:$0xf]
    %v510 = vunpack.c.l.b16 %v478
    %v511 = vunpack.c.l.b16 %v479
    %v512 = vunpack.c.l.b16 %v480
    %v513 = vunpack.c.l.b16 %v481
    %v514 = vunpack.c.l.b16 %v482
    %v515 = vunpack.c.l.b16 %v483
    %v516 = vunpack.c.l.b16 %v484
    %v517 = vunpack.c.l.b16 %v485
    %v518 = vunpack.c.l.b16 %v486
    %v519 = vunpack.c.l.b16 %v487
    %v520 = vunpack.c.l.b16 %v488
    %v521 = vunpack.c.l.b16 %v489
    %v522 = vunpack.c.l.b16 %v490
    %v523 = vunpack.c.l.b16 %v491
    %v524 = vunpack.c.l.b16 %v492
    %v525 = vunpack.c.l.b16 %v493
    %v526 = vpack.c.b16 %v511, %v510
    %v527 = vpack.c.b16 %v513, %v512
    %v528 = vpack.c.b16 %v515, %v514
    %v529 = vpack.c.b16 %v517, %v516
    %v530 = vpack.c.b16 %v519, %v518
    %v531 = vpack.c.b16 %v521, %v520
    %v532 = vpack.c.b16 %v523, %v522
    %v533 = vpack.c.b16 %v525, %v524
    %542 = vmatprep.subr.bf16.mxu0 0
    %543 = vmatpush1.bf16.msra.mxu0 %v526
    %544 = vmatprep.subr.bf16.mxu0 0
    %545 = vmatpush1.bf16.msra.mxu0 %v527
    %546 = vmatprep.subr.bf16.mxu0 0
    %547 = vmatpush1.bf16.msra.mxu0 %v528
    %548 = vmatprep.subr.bf16.mxu0 0
    %549 = vmatpush1.bf16.msra.mxu0 %v529
    %550 = vmatprep.subr.bf16.mxu0 0
    %551 = vmatpush1.bf16.msra.mxu0 %v530
    %552 = vmatprep.subr.bf16.mxu0 0
    %553 = vmatpush1.bf16.msra.mxu0 %v531
    %554 = vmatprep.subr.bf16.mxu0 0
    %555 = vmatpush1.bf16.msra.mxu0 %v532
    %556 = vmatprep.subr.bf16.mxu0 0
    %557 = vmatpush1.bf16.msra.mxu0 %v533
    %558 = vmatprep.subr.bf16.mxu0 0
    %559 = vmatpush1.bf16.msra.mxu0 0
    %560 = vmatprep.subr.bf16.mxu0 0
    %561 = vmatpush1.bf16.msra.mxu0 0
    %562 = vmatprep.subr.bf16.mxu0 0
    %563 = vmatpush1.bf16.msra.mxu0 0
    %564 = vmatprep.subr.bf16.mxu0 0
    %565 = vmatpush1.bf16.msra.mxu0 0
    %566 = vmatprep.subr.bf16.mxu0 0
    %567 = vmatpush1.bf16.msra.mxu0 0
    %568 = vmatprep.subr.bf16.mxu0 0
    %569 = vmatpush1.bf16.msra.mxu0 0
    %570 = vmatprep.subr.bf16.mxu0 0
    %571 = vmatpush1.bf16.msra.mxu0 0
    %572 = vmatprep.subr.bf16.mxu0 0
    %573 = vmatpush1.bf16.msra.mxu0 0
    %574 = vmatprep.mubr.bf16.mxu0 0
    %575 = vmatmul.mubr.bf16.gmra.mrb[0].mxu0 %v476
    %v576 = vpop.f32.mrb[0].mxu0
    %v577 = vadd.f32 0.0, %v576
    %v578 = vpop.f32.mrb[0].mxu0
    %v579 = vpop.f32.mrb[0].mxu0
    %v580 = vadd.f32 0.0, %v579
    %v581 = vpop.f32.mrb[0].mxu0
    %582 = vdwg.mxu0
    %v599 = vunpack.c.l.b16 %v458
    %v600 = vunpack.c.l.b16 %v459
    %v601 = vunpack.c.l.b16 %v460
    %v602 = vunpack.c.l.b16 %v461
    %v603 = vunpack.c.l.b16 %v462
    %v604 = vunpack.c.l.b16 %v463
    %v605 = vunpack.c.l.b16 %v464
    %v606 = vunpack.c.l.b16 %v465
    %v607 = vunpack.c.l.b16 %v466
    %v608 = vunpack.c.l.b16 %v467
    %v609 = vunpack.c.l.b16 %v468
    %v610 = vunpack.c.l.b16 %v469
    %v611 = vunpack.c.l.b16 %v470
    %v612 = vunpack.c.l.b16 %v471
    %v613 = vunpack.c.l.b16 %v472
    %v614 = vunpack.c.l.b16 %v473
    %v615 = vpack.c.b16 %v600, %v599
    %v616 = vpack.c.b16 %v602, %v601
    %v617 = vpack.c.b16 %v604, %v603
    %v618 = vpack.c.b16 %v606, %v605
    %v619 = vpack.c.b16 %v608, %v607
    %v620 = vpack.c.b16 %v610, %v609
    %v621 = vpack.c.b16 %v612, %v611
    %v622 = vpack.c.b16 %v614, %v613
    %631 = vmatprep.subr.bf16.mxu0 0
    %632 = vmatpush1.bf16.msra.mxu0 %v615
    %633 = vmatprep.subr.bf16.mxu0 0
    %634 = vmatpush1.bf16.msra.mxu0 %v616
    %635 = vmatprep.subr.bf16.mxu0 0
    %636 = vmatpush1.bf16.msra.mxu0 %v617
    %637 = vmatprep.subr.bf16.mxu0 0
    %638 = vmatpush1.bf16.msra.mxu0 %v618
    %639 = vmatprep.subr.bf16.mxu0 0
    %640 = vmatpush1.bf16.msra.mxu0 %v619
    %641 = vmatprep.subr.bf16.mxu0 0
    %642 = vmatpush1.bf16.msra.mxu0 %v620
    %643 = vmatprep.subr.bf16.mxu0 0
    %644 = vmatpush1.bf16.msra.mxu0 %v621
    %645 = vmatprep.subr.bf16.mxu0 0
    %646 = vmatpush1.bf16.msra.mxu0 %v622
    %647 = vmatprep.subr.bf16.mxu0 0
    %648 = vmatpush1.bf16.msra.mxu0 0
    %649 = vmatprep.subr.bf16.mxu0 0
    %650 = vmatpush1.bf16.msra.mxu0 0
    %651 = vmatprep.subr.bf16.mxu0 0
    %652 = vmatpush1.bf16.msra.mxu0 0
    %653 = vmatprep.subr.bf16.mxu0 0
    %654 = vmatpush1.bf16.msra.mxu0 0
    %655 = vmatprep.subr.bf16.mxu0 0
    %656 = vmatpush1.bf16.msra.mxu0 0
    %657 = vmatprep.subr.bf16.mxu0 0
    %658 = vmatpush1.bf16.msra.mxu0 0
    %659 = vmatprep.subr.bf16.mxu0 0
    %660 = vmatpush1.bf16.msra.mxu0 0
    %661 = vmatprep.subr.bf16.mxu0 0
    %662 = vmatpush1.bf16.msra.mxu0 0
    %663 = vmatprep.mubr.bf16.mxu0 0
    %664 = vmatmul.mubr.bf16.gmra.mrb[0].mxu0 %v456
    %v665 = vpop.f32.mrb[0].mxu0
    %v666 = vadd.f32 %v577, %v665
    %v667 = vpop.f32.mrb[0].mxu0
    %v668 = vpop.f32.mrb[0].mxu0
    %v669 = vadd.f32 %v580, %v668
    %v670 = vpop.f32.mrb[0].mxu0
    %671 = vdwg.mxu0
    %v672 = vld [vmem:[#allocation2 + $0x2] sm:$0xff]
    %v673 = vld [vmem:[#allocation2 + $0xa] sm:$0xff]
    %v674 = vpack.c.bf16 %v673, %v672
    %s675 = scalar_lea.vmem [#allocation6], 320
    %v676 = vld [vmem:[%s675] sm:$0xf]
    %v677 = vld [vmem:[%s675 + $0x4] sm:$0xf]
    %v678 = vld [vmem:[%s675 + $0x8] sm:$0xf]
    %v679 = vld [vmem:[%s675 + $0xc] sm:$0xf]
    %v680 = vld [vmem:[%s675 + $0x10] sm:$0xf]
    %v681 = vld [vmem:[%s675 + $0x14] sm:$0xf]
    %v682 = vld [vmem:[%s675 + $0x18] sm:$0xf]
    %v683 = vld [vmem:[%s675 + $0x1c] sm:$0xf]
    %v684 = vld [vmem:[%s675 + $0x20] sm:$0xf]
    %v685 = vld [vmem:[%s675 + $0x24] sm:$0xf]
    %v686 = vld [vmem:[%s675 + $0x28] sm:$0xf]
    %v687 = vld [vmem:[%s675 + $0x2c] sm:$0xf]
    %v688 = vld [vmem:[%s675 + $0x30] sm:$0xf]
    %v689 = vld [vmem:[%s675 + $0x34] sm:$0xf]
    %v690 = vld [vmem:[%s675 + $0x38] sm:$0xf]
    %v691 = vld [vmem:[%s675 + $0x3c] sm:$0xf]
    %v708 = vunpack.c.l.b16 %v676
    %v709 = vunpack.c.l.b16 %v677
    %v710 = vunpack.c.l.b16 %v678
    %v711 = vunpack.c.l.b16 %v679
    %v712 = vunpack.c.l.b16 %v680
    %v713 = vunpack.c.l.b16 %v681
    %v714 = vunpack.c.l.b16 %v682
    %v715 = vunpack.c.l.b16 %v683
    %v716 = vunpack.c.l.b16 %v684
    %v717 = vunpack.c.l.b16 %v685
    %v718 = vunpack.c.l.b16 %v686
    %v719 = vunpack.c.l.b16 %v687
    %v720 = vunpack.c.l.b16 %v688
    %v721 = vunpack.c.l.b16 %v689
    %v722 = vunpack.c.l.b16 %v690
    %v723 = vunpack.c.l.b16 %v691
    %v724 = vpack.c.b16 %v709, %v708
    %v725 = vpack.c.b16 %v711, %v710
    %v726 = vpack.c.b16 %v713, %v712
    %v727 = vpack.c.b16 %v715, %v714
    %v728 = vpack.c.b16 %v717, %v716
    %v729 = vpack.c.b16 %v719, %v718
    %v730 = vpack.c.b16 %v721, %v720
    %v731 = vpack.c.b16 %v723, %v722
    %740 = vmatprep.subr.bf16.mxu0 0
    %741 = vmatpush1.bf16.msra.mxu0 %v724
    %742 = vmatprep.subr.bf16.mxu0 0
    %743 = vmatpush1.bf16.msra.mxu0 %v725
    %744 = vmatprep.subr.bf16.mxu0 0
    %745 = vmatpush1.bf16.msra.mxu0 %v726
    %746 = vmatprep.subr.bf16.mxu0 0
    %747 = vmatpush1.bf16.msra.mxu0 %v727
    %748 = vmatprep.subr.bf16.mxu0 0
    %749 = vmatpush1.bf16.msra.mxu0 %v728
    %750 = vmatprep.subr.bf16.mxu0 0
    %751 = vmatpush1.bf16.msra.mxu0 %v729
    %752 = vmatprep.subr.bf16.mxu0 0
    %753 = vmatpush1.bf16.msra.mxu0 %v730
    %754 = vmatprep.subr.bf16.mxu0 0
    %755 = vmatpush1.bf16.msra.mxu0 %v731
    %756 = vmatprep.subr.bf16.mxu0 0
    %757 = vmatpush1.bf16.msra.mxu0 0
    %758 = vmatprep.subr.bf16.mxu0 0
    %759 = vmatpush1.bf16.msra.mxu0 0
    %760 = vmatprep.subr.bf16.mxu0 0
    %761 = vmatpush1.bf16.msra.mxu0 0
    %762 = vmatprep.subr.bf16.mxu0 0
    %763 = vmatpush1.bf16.msra.mxu0 0
    %764 = vmatprep.subr.bf16.mxu0 0
    %765 = vmatpush1.bf16.msra.mxu0 0
    %766 = vmatprep.subr.bf16.mxu0 0
    %767 = vmatpush1.bf16.msra.mxu0 0
    %768 = vmatprep.subr.bf16.mxu0 0
    %769 = vmatpush1.bf16.msra.mxu0 0
    %770 = vmatprep.subr.bf16.mxu0 0
    %771 = vmatpush1.bf16.msra.mxu0 0
    %772 = vmatprep.mubr.bf16.mxu0 0
    %773 = vmatmul.mubr.bf16.gmra.mrb[0].mxu0 %v674
    %v774 = vpop.f32.mrb[0].mxu0
    %v775 = vadd.f32 0.0, %v774
    %v776 = vpop.f32.mrb[0].mxu0
    %v777 = vpop.f32.mrb[0].mxu0
    %v778 = vadd.f32 0.0, %v777
    %v779 = vpop.f32.mrb[0].mxu0
    %780 = vdwg.mxu0
    %v781 = vadd.f32 %v666, %v775
    %v782 = vadd.f32 %v669, %v778
    %v783 = vadd.f32 %v49, %v781
    %v784 = vadd.f32 %v50, %v782
    %v785 = vmax.f32 %v783, 0.0
    %v786 = vmax.f32 %v784, 0.0
    %v787 = vadd.f32 %v785, %v786
    %v788 = vrot.slane %v787, 4
    %v789 = vadd.f32 %v787, %v788
    %v790 = vrot.slane %v789, 2
    %v791 = vadd.f32 %v789, %v790
    %v792 = vrot.slane %v791, 1
    %v793 = vadd.f32 %v791, %v792
    %794 = vrot.lane.b32.xlu0 %v793, 4
    %v795 = vpop.permute.xlu0 %794
    %v796 = vadd.f32 %v793, %v795
    %797 = vrot.lane.b32.xlu0 %v796, 8
    %v798 = vpop.permute.xlu0 %797
    %v799 = vadd.f32 %v796, %v798
    %800 = vrot.lane.b32.xlu0 %v799, 16
    %v801 = vpop.permute.xlu0 %800
    %v802 = vadd.f32 %v799, %v801
    %803 = vrot.lane.b32.xlu0 %v802, 32
    %v804 = vpop.permute.xlu0 %803
    %v805 = vadd.f32 %v802, %v804
    %806 = vrot.lane.b32.xlu0 %v805, 64
    %v807 = vpop.permute.xlu0 %806
    %v808 = vadd.f32 %v805, %v807
    %v809 = vmul.f32 %v785, %v785
    %v810 = vmul.f32 %v786, %v786
    %v811 = vadd.f32 %v809, %v810
    %v812 = vrot.slane %v811, 4
    %v813 = vadd.f32 %v811, %v812
    %v814 = vrot.slane %v813, 2
    %v815 = vadd.f32 %v813, %v814
    %v816 = vrot.slane %v815, 1
    %v817 = vadd.f32 %v815, %v816
    %818 = vrot.lane.b32.xlu0 %v817, 4
    %v819 = vpop.permute.xlu0 %818
    %v820 = vadd.f32 %v817, %v819
    %821 = vrot.lane.b32.xlu0 %v820, 8
    %v822 = vpop.permute.xlu0 %821
    %v823 = vadd.f32 %v820, %v822
    %824 = vrot.lane.b32.xlu0 %v823, 16
    %v825 = vpop.permute.xlu0 %824
    %v826 = vadd.f32 %v823, %v825
    %827 = vrot.lane.b32.xlu0 %v826, 32
    %v828 = vpop.permute.xlu0 %827
    %v829 = vadd.f32 %v826, %v828
    %830 = vrot.lane.b32.xlu0 %v829, 64
    %v831 = vpop.permute.xlu0 %830
    %v832 = vadd.f32 %v829, %v831
    %v833 = vmul.f32 %v808, 0.001953125
    %v834 = vmul.f32 %v832, 0.001953125
    %v835 = vmul.f32 %v833, %v833
    %v836 = vsub.f32 %v834, %v835
    %v837 = vld [vmem:[%s2 + $0x1] sm:$0x1]
    %v838 = vadd.f32 %v836, 1e-05
    %v839 = vrsqrt.pop %v838
    %v840 = vmul.f32 %v837, %v839
    %v841 = vld [vmem:[%s3 + $0x1] sm:$0x1]
    %v842 = vmul.f32 %v833, %v840
    %v843 = vsub.f32 %v841, %v842
    %v844 = vlaneseq
    %v845 = vshrl.u32 %v844, 7
    %v846 = vsub.s32 0, %v845
    %v847 = vrot.slane %v840, %v846
    %v848 = vmul.f32 %v785, %v847
    %v849 = vmul.f32 %v786, %v847
    %v850 = vlaneseq
    %v851 = vshrl.u32 %v850, 7
    %v852 = vsub.s32 0, %v851
    %v853 = vrot.slane %v843, %v852
    %v854 = vadd.f32 %v848, %v853
    %v855 = vadd.f32 %v849, %v853
    %856 = vst [vmem:[#allocation2 + $0x1] sm:$0xff] %v854
    %857 = vst [vmem:[#allocation2 + $0x9] sm:$0xff] %v855
    %v858 = vld [vmem:[#allocation2] sm:$0xff]
    %v859 = vld [vmem:[#allocation2 + $0x8] sm:$0xff]
    %v860 = vpack.c.bf16 %v859, %v858
    %s861 = scalar_lea.vmem [#allocation6], 384
    %v862 = vld [vmem:[%s861] sm:$0xf]
    %v863 = vld [vmem:[%s861 + $0x4] sm:$0xf]
    %v864 = vld [vmem:[%s861 + $0x8] sm:$0xf]
    %v865 = vld [vmem:[%s861 + $0xc] sm:$0xf]
    %v866 = vld [vmem:[%s861 + $0x10] sm:$0xf]
    %v867 = vld [vmem:[%s861 + $0x14] sm:$0xf]
    %v868 = vld [vmem:[%s861 + $0x18] sm:$0xf]
    %v869 = vld [vmem:[%s861 + $0x1c] sm:$0xf]
    %v870 = vld [vmem:[%s861 + $0x20] sm:$0xf]
    %v871 = vld [vmem:[%s861 + $0x24] sm:$0xf]
    %v872 = vld [vmem:[%s861 + $0x28] sm:$0xf]
    %v873 = vld [vmem:[%s861 + $0x2c] sm:$0xf]
    %v874 = vld [vmem:[%s861 + $0x30] sm:$0xf]
    %v875 = vld [vmem:[%s861 + $0x34] sm:$0xf]
    %v876 = vld [vmem:[%s861 + $0x38] sm:$0xf]
    %v877 = vld [vmem:[%s861 + $0x3c] sm:$0xf]
    %v878 = vld [vmem:[#allocation2 + $0x1] sm:$0xff]
    %v879 = vld [vmem:[#allocation2 + $0x9] sm:$0xff]
    %v880 = vpack.c.bf16 %v879, %v878
    %s881 = scalar_lea.vmem [#allocation6], 448
    %v882 = vld [vmem:[%s881] sm:$0xf]
    %v883 = vld [vmem:[%s881 + $0x4] sm:$0xf]
    %v884 = vld [vmem:[%s881 + $0x8] sm:$0xf]
    %v885 = vld [vmem:[%s881 + $0xc] sm:$0xf]
    %v886 = vld [vmem:[%s881 + $0x10] sm:$0xf]
    %v887 = vld [vmem:[%s881 + $0x14] sm:$0xf]
    %v888 = vld [vmem:[%s881 + $0x18] sm:$0xf]
    %v889 = vld [vmem:[%s881 + $0x1c] sm:$0xf]
    %v890 = vld [vmem:[%s881 + $0x20] sm:$0xf]
    %v891 = vld [vmem:[%s881 + $0x24] sm:$0xf]
    %v892 = vld [vmem:[%s881 + $0x28] sm:$0xf]
    %v893 = vld [vmem:[%s881 + $0x2c] sm:$0xf]
    %v894 = vld [vmem:[%s881 + $0x30] sm:$0xf]
    %v895 = vld [vmem:[%s881 + $0x34] sm:$0xf]
    %v896 = vld [vmem:[%s881 + $0x38] sm:$0xf]
    %v897 = vld [vmem:[%s881 + $0x3c] sm:$0xf]
    %v914 = vunpack.c.l.b16 %v882
    %v915 = vunpack.c.l.b16 %v883
    %v916 = vunpack.c.l.b16 %v884
    %v917 = vunpack.c.l.b16 %v885
    %v918 = vunpack.c.l.b16 %v886
    %v919 = vunpack.c.l.b16 %v887
    %v920 = vunpack.c.l.b16 %v888
    %v921 = vunpack.c.l.b16 %v889
    %v922 = vunpack.c.l.b16 %v890
    %v923 = vunpack.c.l.b16 %v891
    %v924 = vunpack.c.l.b16 %v892
    %v925 = vunpack.c.l.b16 %v893
    %v926 = vunpack.c.l.b16 %v894
    %v927 = vunpack.c.l.b16 %v895
    %v928 = vunpack.c.l.b16 %v896
    %v929 = vunpack.c.l.b16 %v897
    %v930 = vpack.c.b16 %v915, %v914
    %v931 = vpack.c.b16 %v917, %v916
    %v932 = vpack.c.b16 %v919, %v918
    %v933 = vpack.c.b16 %v921, %v920
    %v934 = vpack.c.b16 %v923, %v922
    %v935 = vpack.c.b16 %v925, %v924
    %v936 = vpack.c.b16 %v927, %v926
    %v937 = vpack.c.b16 %v929, %v928
    %946 = vmatprep.subr.bf16.mxu0 0
    %947 = vmatpush1.bf16.msra.mxu0 %v930
    %948 = vmatprep.subr.bf16.mxu0 0
    %949 = vmatpush1.bf16.msra.mxu0 %v931
    %950 = vmatprep.subr.bf16.mxu0 0
    %951 = vmatpush1.bf16.msra.mxu0 %v932
    %952 = vmatprep.subr.bf16.mxu0 0
    %953 = vmatpush1.bf16.msra.mxu0 %v933
    %954 = vmatprep.subr.bf16.mxu0 0
    %955 = vmatpush1.bf16.msra.mxu0 %v934
    %956 = vmatprep.subr.bf16.mxu0 0
    %957 = vmatpush1.bf16.msra.mxu0 %v935
    %958 = vmatprep.subr.bf16.mxu0 0
    %959 = vmatpush1.bf16.msra.mxu0 %v936
    %960 = vmatprep.subr.bf16.mxu0 0
    %961 = vmatpush1.bf16.msra.mxu0 %v937
    %962 = vmatprep.subr.bf16.mxu0 0
    %963 = vmatpush1.bf16.msra.mxu0 0
    %964 = vmatprep.subr.bf16.mxu0 0
    %965 = vmatpush1.bf16.msra.mxu0 0
    %966 = vmatprep.subr.bf16.mxu0 0
    %967 = vmatpush1.bf16.msra.mxu0 0
    %968 = vmatprep.subr.bf16.mxu0 0
    %969 = vmatpush1.bf16.msra.mxu0 0
    %970 = vmatprep.subr.bf16.mxu0 0
    %971 = vmatpush1.bf16.msra.mxu0 0
    %972 = vmatprep.subr.bf16.mxu0 0
    %973 = vmatpush1.bf16.msra.mxu0 0
    %974 = vmatprep.subr.bf16.mxu0 0
    %975 = vmatpush1.bf16.msra.mxu0 0
    %976 = vmatprep.subr.bf16.mxu0 0
    %977 = vmatpush1.bf16.msra.mxu0 0
    %978 = vmatprep.mubr.bf16.mxu0 0
    %979 = vmatmul.mubr.bf16.gmra.mrb[0].mxu0 %v880
    %v980 = vpop.f32.mrb[0].mxu0
    %v981 = vadd.f32 0.0, %v980
    %v982 = vpop.f32.mrb[0].mxu0
    %v983 = vpop.f32.mrb[0].mxu0
    %v984 = vadd.f32 0.0, %v983
    %v985 = vpop.f32.mrb[0].mxu0
    %986 = vdwg.mxu0
    %v1003 = vunpack.c.l.b16 %v862
    %v1004 = vunpack.c.l.b16 %v863
    %v1005 = vunpack.c.l.b16 %v864
    %v1006 = vunpack.c.l.b16 %v865
    %v1007 = vunpack.c.l.b16 %v866
    %v1008 = vunpack.c.l.b16 %v867
    %v1009 = vunpack.c.l.b16 %v868
    %v1010 = vunpack.c.l.b16 %v869
    %v1011 = vunpack.c.l.b16 %v870
    %v1012 = vunpack.c.l.b16 %v871
    %v1013 = vunpack.c.l.b16 %v872
    %v1014 = vunpack.c.l.b16 %v873
    %v1015 = vunpack.c.l.b16 %v874
    %v1016 = vunpack.c.l.b16 %v875
    %v1017 = vunpack.c.l.b16 %v876
    %v1018 = vunpack.c.l.b16 %v877
    %v1019 = vpack.c.b16 %v1004, %v1003
    %v1020 = vpack.c.b16 %v1006, %v1005
    %v1021 = vpack.c.b16 %v1008, %v1007
    %v1022 = vpack.c.b16 %v1010, %v1009
    %v1023 = vpack.c.b16 %v1012, %v1011
    %v1024 = vpack.c.b16 %v1014, %v1013
    %v1025 = vpack.c.b16 %v1016, %v1015
    %v1026 = vpack.c.b16 %v1018, %v1017
    %1035 = vmatprep.subr.bf16.mxu0 0
    %1036 = vmatpush1.bf16.msra.mxu0 %v1019
    %1037 = vmatprep.subr.bf16.mxu0 0
    %1038 = vmatpush1.bf16.msra.mxu0 %v1020
    %1039 = vmatprep.subr.bf16.mxu0 0
    %1040 = vmatpush1.bf16.msra.mxu0 %v1021
    %1041 = vmatprep.subr.bf16.mxu0 0
    %1042 = vmatpush1.bf16.msra.mxu0 %v1022
    %1043 = vmatprep.subr.bf16.mxu0 0
    %1044 = vmatpush1.bf16.msra.mxu0 %v1023
    %1045 = vmatprep.subr.bf16.mxu0 0
    %1046 = vmatpush1.bf16.msra.mxu0 %v1024
    %1047 = vmatprep.subr.bf16.mxu0 0
    %1048 = vmatpush1.bf16.msra.mxu0 %v1025
    %1049 = vmatprep.subr.bf16.mxu0 0
    %1050 = vmatpush1.bf16.msra.mxu0 %v1026
    %1051 = vmatprep.subr.bf16.mxu0 0
    %1052 = vmatpush1.bf16.msra.mxu0 0
    %1053 = vmatprep.subr.bf16.mxu0 0
    %1054 = vmatpush1.bf16.msra.mxu0 0
    %1055 = vmatprep.subr.bf16.mxu0 0
    %1056 = vmatpush1.bf16.msra.mxu0 0
    %1057 = vmatprep.subr.bf16.mxu0 0
    %1058 = vmatpush1.bf16.msra.mxu0 0
    %1059 = vmatprep.subr.bf16.mxu0 0
    %1060 = vmatpush1.bf16.msra.mxu0 0
    %1061 = vmatprep.subr.bf16.mxu0 0
    %1062 = vmatpush1.bf16.msra.mxu0 0
    %1063 = vmatprep.subr.bf16.mxu0 0
    %1064 = vmatpush1.bf16.msra.mxu0 0
    %1065 = vmatprep.subr.bf16.mxu0 0
    %1066 = vmatpush1.bf16.msra.mxu0 0
    %1067 = vmatprep.mubr.bf16.mxu0 0
    %1068 = vmatmul.mubr.bf16.gmra.mrb[0].mxu0 %v860
    %v1069 = vpop.f32.mrb[0].mxu0
    %v1070 = vadd.f32 %v981, %v1069
    %v1071 = vpop.f32.mrb[0].mxu0
    %v1072 = vpop.f32.mrb[0].mxu0
    %v1073 = vadd.f32 %v984, %v1072
    %v1074 = vpop.f32.mrb[0].mxu0
    %1075 = vdwg.mxu0
    %v1076 = vld [vmem:[#allocation2 + $0x2] sm:$0xff]
    %v1077 = vld [vmem:[#allocation2 + $0xa] sm:$0xff]
    %v1078 = vpack.c.bf16 %v1077, %v1076
    %s1079 = scalar_lea.vmem [#allocation6], 512
    %v1080 = vld [vmem:[%s1079] sm:$0xf]
    %v1081 = vld [vmem:[%s1079 + $0x4] sm:$0xf]
    %v1082 = vld [vmem:[%s1079 + $0x8] sm:$0xf]
    %v1083 = vld [vmem:[%s1079 + $0xc] sm:$0xf]
    %v1084 = vld [vmem:[%s1079 + $0x10] sm:$0xf]
    %v1085 = vld [vmem:[%s1079 + $0x14] sm:$0xf]
    %v1086 = vld [vmem:[%s1079 + $0x18] sm:$0xf]
    %v1087 = vld [vmem:[%s1079 + $0x1c] sm:$0xf]
    %v1088 = vld [vmem:[%s1079 + $0x20] sm:$0xf]
    %v1089 = vld [vmem:[%s1079 + $0x24] sm:$0xf]
    %v1090 = vld [vmem:[%s1079 + $0x28] sm:$0xf]
    %v1091 = vld [vmem:[%s1079 + $0x2c] sm:$0xf]
    %v1092 = vld [vmem:[%s1079 + $0x30] sm:$0xf]
    %v1093 = vld [vmem:[%s1079 + $0x34] sm:$0xf]
    %v1094 = vld [vmem:[%s1079 + $0x38] sm:$0xf]
    %v1095 = vld [vmem:[%s1079 + $0x3c] sm:$0xf]
    %v1112 = vunpack.c.l.b16 %v1080
    %v1113 = vunpack.c.l.b16 %v1081
    %v1114 = vunpack.c.l.b16 %v1082
    %v1115 = vunpack.c.l.b16 %v1083
    %v1116 = vunpack.c.l.b16 %v1084
    %v1117 = vunpack.c.l.b16 %v1085
    %v1118 = vunpack.c.l.b16 %v1086
    %v1119 = vunpack.c.l.b16 %v1087
    %v1120 = vunpack.c.l.b16 %v1088
    %v1121 = vunpack.c.l.b16 %v1089
    %v1122 = vunpack.c.l.b16 %v1090
    %v1123 = vunpack.c.l.b16 %v1091
    %v1124 = vunpack.c.l.b16 %v1092
    %v1125 = vunpack.c.l.b16 %v1093
    %v1126 = vunpack.c.l.b16 %v1094
    %v1127 = vunpack.c.l.b16 %v1095
    %v1128 = vpack.c.b16 %v1113, %v1112
    %v1129 = vpack.c.b16 %v1115, %v1114
    %v1130 = vpack.c.b16 %v1117, %v1116
    %v1131 = vpack.c.b16 %v1119, %v1118
    %v1132 = vpack.c.b16 %v1121, %v1120
    %v1133 = vpack.c.b16 %v1123, %v1122
    %v1134 = vpack.c.b16 %v1125, %v1124
    %v1135 = vpack.c.b16 %v1127, %v1126
    %1144 = vmatprep.subr.bf16.mxu0 0
    %1145 = vmatpush1.bf16.msra.mxu0 %v1128
    %1146 = vmatprep.subr.bf16.mxu0 0
    %1147 = vmatpush1.bf16.msra.mxu0 %v1129
    %1148 = vmatprep.subr.bf16.mxu0 0
    %1149 = vmatpush1.bf16.msra.mxu0 %v1130
    %1150 = vmatprep.subr.bf16.mxu0 0
    %1151 = vmatpush1.bf16.msra.mxu0 %v1131
    %1152 = vmatprep.subr.bf16.mxu0 0
    %1153 = vmatpush1.bf16.msra.mxu0 %v1132
    %1154 = vmatprep.subr.bf16.mxu0 0
    %1155 = vmatpush1.bf16.msra.mxu0 %v1133
    %1156 = vmatprep.subr.bf16.mxu0 0
    %1157 = vmatpush1.bf16.msra.mxu0 %v1134
    %1158 = vmatprep.subr.bf16.mxu0 0
    %1159 = vmatpush1.bf16.msra.mxu0 %v1135
    %1160 = vmatprep.subr.bf16.mxu0 0
    %1161 = vmatpush1.bf16.msra.mxu0 0
    %1162 = vmatprep.subr.bf16.mxu0 0
    %1163 = vmatpush1.bf16.msra.mxu0 0
    %1164 = vmatprep.subr.bf16.mxu0 0
    %1165 = vmatpush1.bf16.msra.mxu0 0
    %1166 = vmatprep.subr.bf16.mxu0 0
    %1167 = vmatpush1.bf16.msra.mxu0 0
    %1168 = vmatprep.subr.bf16.mxu0 0
    %1169 = vmatpush1.bf16.msra.mxu0 0
    %1170 = vmatprep.subr.bf16.mxu0 0
    %1171 = vmatpush1.bf16.msra.mxu0 0
    %1172 = vmatprep.subr.bf16.mxu0 0
    %1173 = vmatpush1.bf16.msra.mxu0 0
    %1174 = vmatprep.subr.bf16.mxu0 0
    %1175 = vmatpush1.bf16.msra.mxu0 0
    %1176 = vmatprep.mubr.bf16.mxu0 0
    %1177 = vmatmul.mubr.bf16.gmra.mrb[0].mxu0 %v1078
    %v1178 = vpop.f32.mrb[0].mxu0
    %v1179 = vadd.f32 0.0, %v1178
    %v1180 = vpop.f32.mrb[0].mxu0
    %v1181 = vpop.f32.mrb[0].mxu0
    %v1182 = vadd.f32 0.0, %v1181
    %v1183 = vpop.f32.mrb[0].mxu0
    %1184 = vdwg.mxu0
    %v1185 = vadd.f32 %v1070, %v1179
    %v1186 = vadd.f32 %v1073, %v1182
    %v1187 = vmax.f32 %v1185, 0.0
    %v1188 = vmax.f32 %v1186, 0.0
    %v1189 = vadd.f32 %v1187, %v1188
    %v1190 = vrot.slane %v1189, 4
    %v1191 = vadd.f32 %v1189, %v1190
    %v1192 = vrot.slane %v1191, 2
    %v1193 = vadd.f32 %v1191, %v1192
    %v1194 = vrot.slane %v1193, 1
    %v1195 = vadd.f32 %v1193, %v1194
    %1196 = vrot.lane.b32.xlu0 %v1195, 4
    %v1197 = vpop.permute.xlu0 %1196
    %v1198 = vadd.f32 %v1195, %v1197
    %1199 = vrot.lane.b32.xlu0 %v1198, 8
    %v1200 = vpop.permute.xlu0 %1199
    %v1201 = vadd.f32 %v1198, %v1200
    %1202 = vrot.lane.b32.xlu0 %v1201, 16
    %v1203 = vpop.permute.xlu0 %1202
    %v1204 = vadd.f32 %v1201, %v1203
    %1205 = vrot.lane.b32.xlu0 %v1204, 32
    %v1206 = vpop.permute.xlu0 %1205
    %v1207 = vadd.f32 %v1204, %v1206
    %1208 = vrot.lane.b32.xlu0 %v1207, 64
    %v1209 = vpop.permute.xlu0 %1208
    %v1210 = vadd.f32 %v1207, %v1209
    %v1211 = vmul.f32 %v1187, %v1187
    %v1212 = vmul.f32 %v1188, %v1188
    %v1213 = vadd.f32 %v1211, %v1212
    %v1214 = vrot.slane %v1213, 4
    %v1215 = vadd.f32 %v1213, %v1214
    %v1216 = vrot.slane %v1215, 2
    %v1217 = vadd.f32 %v1215, %v1216
    %v1218 = vrot.slane %v1217, 1
    %v1219 = vadd.f32 %v1217, %v1218
    %1220 = vrot.lane.b32.xlu0 %v1219, 4
    %v1221 = vpop.permute.xlu0 %1220
    %v1222 = vadd.f32 %v1219, %v1221
    %1223 = vrot.lane.b32.xlu0 %v1222, 8
    %v1224 = vpop.permute.xlu0 %1223
    %v1225 = vadd.f32 %v1222, %v1224
    %1226 = vrot.lane.b32.xlu0 %v1225, 16
    %v1227 = vpop.permute.xlu0 %1226
    %v1228 = vadd.f32 %v1225, %v1227
    %1229 = vrot.lane.b32.xlu0 %v1228, 32
    %v1230 = vpop.permute.xlu0 %1229
    %v1231 = vadd.f32 %v1228, %v1230
    %1232 = vrot.lane.b32.xlu0 %v1231, 64
    %v1233 = vpop.permute.xlu0 %1232
    %v1234 = vadd.f32 %v1231, %v1233
    %v1235 = vmul.f32 %v1210, 0.001953125
    %v1236 = vmul.f32 %v1234, 0.001953125
    %v1237 = vmul.f32 %v1235, %v1235
    %v1238 = vsub.f32 %v1236, %v1237
    %v1239 = vld [vmem:[%s2 + $0x2] sm:$0x1]
    %v1240 = vadd.f32 %v1238, 1e-05
    %v1241 = vrsqrt.pop %v1240
    %v1242 = vmul.f32 %v1239, %v1241
    %v1243 = vld [vmem:[%s3 + $0x2] sm:$0x1]
    %v1244 = vmul.f32 %v1235, %v1242
    %v1245 = vsub.f32 %v1243, %v1244
    %v1246 = vlaneseq
    %v1247 = vshrl.u32 %v1246, 7
    %v1248 = vsub.s32 0, %v1247
    %v1249 = vrot.slane %v1242, %v1248
    %v1250 = vmul.f32 %v1187, %v1249
    %v1251 = vmul.f32 %v1188, %v1249
    %v1252 = vlaneseq
    %v1253 = vshrl.u32 %v1252, 7
    %v1254 = vsub.s32 0, %v1253
    %v1255 = vrot.slane %v1245, %v1254
    %v1256 = vadd.f32 %v1250, %v1255
    %v1257 = vadd.f32 %v1251, %v1255
    %1258 = vst [vmem:[#allocation2 + $0x1] sm:$0xff] %v1256
    %1259 = vst [vmem:[#allocation2 + $0x9] sm:$0xff] %v1257
    %v1260 = vld [vmem:[#allocation2] sm:$0xff]
    %v1261 = vld [vmem:[#allocation2 + $0x8] sm:$0xff]
    %v1262 = vpack.c.bf16 %v1261, %v1260
    %s1263 = scalar_lea.vmem [#allocation6], 576
    %v1264 = vld [vmem:[%s1263] sm:$0xf]
    %v1265 = vld [vmem:[%s1263 + $0x4] sm:$0xf]
    %v1266 = vld [vmem:[%s1263 + $0x8] sm:$0xf]
    %v1267 = vld [vmem:[%s1263 + $0xc] sm:$0xf]
    %v1268 = vld [vmem:[%s1263 + $0x10] sm:$0xf]
    %v1269 = vld [vmem:[%s1263 + $0x14] sm:$0xf]
    %v1270 = vld [vmem:[%s1263 + $0x18] sm:$0xf]
    %v1271 = vld [vmem:[%s1263 + $0x1c] sm:$0xf]
    %v1272 = vld [vmem:[%s1263 + $0x20] sm:$0xf]
    %v1273 = vld [vmem:[%s1263 + $0x24] sm:$0xf]
    %v1274 = vld [vmem:[%s1263 + $0x28] sm:$0xf]
    %v1275 = vld [vmem:[%s1263 + $0x2c] sm:$0xf]
    %v1276 = vld [vmem:[%s1263 + $0x30] sm:$0xf]
    %v1277 = vld [vmem:[%s1263 + $0x34] sm:$0xf]
    %v1278 = vld [vmem:[%s1263 + $0x38] sm:$0xf]
    %v1279 = vld [vmem:[%s1263 + $0x3c] sm:$0xf]
    %v1280 = vld [vmem:[#allocation2 + $0x1] sm:$0xff]
    %v1281 = vld [vmem:[#allocation2 + $0x9] sm:$0xff]
    %v1282 = vpack.c.bf16 %v1281, %v1280
    %s1283 = scalar_lea.vmem [#allocation6], 640
    %v1284 = vld [vmem:[%s1283] sm:$0xf]
    %v1285 = vld [vmem:[%s1283 + $0x4] sm:$0xf]
    %v1286 = vld [vmem:[%s1283 + $0x8] sm:$0xf]
    %v1287 = vld [vmem:[%s1283 + $0xc] sm:$0xf]
    %v1288 = vld [vmem:[%s1283 + $0x10] sm:$0xf]
    %v1289 = vld [vmem:[%s1283 + $0x14] sm:$0xf]
    %v1290 = vld [vmem:[%s1283 + $0x18] sm:$0xf]
    %v1291 = vld [vmem:[%s1283 + $0x1c] sm:$0xf]
    %v1292 = vld [vmem:[%s1283 + $0x20] sm:$0xf]
    %v1293 = vld [vmem:[%s1283 + $0x24] sm:$0xf]
    %v1294 = vld [vmem:[%s1283 + $0x28] sm:$0xf]
    %v1295 = vld [vmem:[%s1283 + $0x2c] sm:$0xf]
    %v1296 = vld [vmem:[%s1283 + $0x30] sm:$0xf]
    %v1297 = vld [vmem:[%s1283 + $0x34] sm:$0xf]
    %v1298 = vld [vmem:[%s1283 + $0x38] sm:$0xf]
    %v1299 = vld [vmem:[%s1283 + $0x3c] sm:$0xf]
    %v1316 = vunpack.c.l.b16 %v1284
    %v1317 = vunpack.c.l.b16 %v1285
    %v1318 = vunpack.c.l.b16 %v1286
    %v1319 = vunpack.c.l.b16 %v1287
    %v1320 = vunpack.c.l.b16 %v1288
    %v1321 = vunpack.c.l.b16 %v1289
    %v1322 = vunpack.c.l.b16 %v1290
    %v1323 = vunpack.c.l.b16 %v1291
    %v1324 = vunpack.c.l.b16 %v1292
    %v1325 = vunpack.c.l.b16 %v1293
    %v1326 = vunpack.c.l.b16 %v1294
    %v1327 = vunpack.c.l.b16 %v1295
    %v1328 = vunpack.c.l.b16 %v1296
    %v1329 = vunpack.c.l.b16 %v1297
    %v1330 = vunpack.c.l.b16 %v1298
    %v1331 = vunpack.c.l.b16 %v1299
    %v1332 = vpack.c.b16 %v1317, %v1316
    %v1333 = vpack.c.b16 %v1319, %v1318
    %v1334 = vpack.c.b16 %v1321, %v1320
    %v1335 = vpack.c.b16 %v1323, %v1322
    %v1336 = vpack.c.b16 %v1325, %v1324
    %v1337 = vpack.c.b16 %v1327, %v1326
    %v1338 = vpack.c.b16 %v1329, %v1328
    %v1339 = vpack.c.b16 %v1331, %v1330
    %1348 = vmatprep.subr.bf16.mxu0 0
    %1349 = vmatpush1.bf16.msra.mxu0 %v1332
    %1350 = vmatprep.subr.bf16.mxu0 0
    %1351 = vmatpush1.bf16.msra.mxu0 %v1333
    %1352 = vmatprep.subr.bf16.mxu0 0
    %1353 = vmatpush1.bf16.msra.mxu0 %v1334
    %1354 = vmatprep.subr.bf16.mxu0 0
    %1355 = vmatpush1.bf16.msra.mxu0 %v1335
    %1356 = vmatprep.subr.bf16.mxu0 0
    %1357 = vmatpush1.bf16.msra.mxu0 %v1336
    %1358 = vmatprep.subr.bf16.mxu0 0
    %1359 = vmatpush1.bf16.msra.mxu0 %v1337
    %1360 = vmatprep.subr.bf16.mxu0 0
    %1361 = vmatpush1.bf16.msra.mxu0 %v1338
    %1362 = vmatprep.subr.bf16.mxu0 0
    %1363 = vmatpush1.bf16.msra.mxu0 %v1339
    %1364 = vmatprep.subr.bf16.mxu0 0
    %1365 = vmatpush1.bf16.msra.mxu0 0
    %1366 = vmatprep.subr.bf16.mxu0 0
    %1367 = vmatpush1.bf16.msra.mxu0 0
    %1368 = vmatprep.subr.bf16.mxu0 0
    %1369 = vmatpush1.bf16.msra.mxu0 0
    %1370 = vmatprep.subr.bf16.mxu0 0
    %1371 = vmatpush1.bf16.msra.mxu0 0
    %1372 = vmatprep.subr.bf16.mxu0 0
    %1373 = vmatpush1.bf16.msra.mxu0 0
    %1374 = vmatprep.subr.bf16.mxu0 0
    %1375 = vmatpush1.bf16.msra.mxu0 0
    %1376 = vmatprep.subr.bf16.mxu0 0
    %1377 = vmatpush1.bf16.msra.mxu0 0
    %1378 = vmatprep.subr.bf16.mxu0 0
    %1379 = vmatpush1.bf16.msra.mxu0 0
    %1380 = vmatprep.mubr.bf16.mxu0 0
    %1381 = vmatmul.mubr.bf16.gmra.mrb[0].mxu0 %v1282
    %v1382 = vpop.f32.mrb[0].mxu0
    %v1383 = vadd.f32 0.0, %v1382
    %v1384 = vpop.f32.mrb[0].mxu0
    %v1385 = vpop.f32.mrb[0].mxu0
    %v1386 = vadd.f32 0.0, %v1385
    %v1387 = vpop.f32.mrb[0].mxu0
    %1388 = vdwg.mxu0
    %v1405 = vunpack.c.l.b16 %v1264
    %v1406 = vunpack.c.l.b16 %v1265
    %v1407 = vunpack.c.l.b16 %v1266
    %v1408 = vunpack.c.l.b16 %v1267
    %v1409 = vunpack.c.l.b16 %v1268
    %v1410 = vunpack.c.l.b16 %v1269
    %v1411 = vunpack.c.l.b16 %v1270
    %v1412 = vunpack.c.l.b16 %v1271
    %v1413 = vunpack.c.l.b16 %v1272
    %v1414 = vunpack.c.l.b16 %v1273
    %v1415 = vunpack.c.l.b16 %v1274
    %v1416 = vunpack.c.l.b16 %v1275
    %v1417 = vunpack.c.l.b16 %v1276
    %v1418 = vunpack.c.l.b16 %v1277
    %v1419 = vunpack.c.l.b16 %v1278
    %v1420 = vunpack.c.l.b16 %v1279
    %v1421 = vpack.c.b16 %v1406, %v1405
    %v1422 = vpack.c.b16 %v1408, %v1407
    %v1423 = vpack.c.b16 %v1410, %v1409
    %v1424 = vpack.c.b16 %v1412, %v1411
    %v1425 = vpack.c.b16 %v1414, %v1413
    %v1426 = vpack.c.b16 %v1416, %v1415
    %v1427 = vpack.c.b16 %v1418, %v1417
    %v1428 = vpack.c.b16 %v1420, %v1419
    %1437 = vmatprep.subr.bf16.mxu0 0
    %1438 = vmatpush1.bf16.msra.mxu0 %v1421
    %1439 = vmatprep.subr.bf16.mxu0 0
    %1440 = vmatpush1.bf16.msra.mxu0 %v1422
    %1441 = vmatprep.subr.bf16.mxu0 0
    %1442 = vmatpush1.bf16.msra.mxu0 %v1423
    %1443 = vmatprep.subr.bf16.mxu0 0
    %1444 = vmatpush1.bf16.msra.mxu0 %v1424
    %1445 = vmatprep.subr.bf16.mxu0 0
    %1446 = vmatpush1.bf16.msra.mxu0 %v1425
    %1447 = vmatprep.subr.bf16.mxu0 0
    %1448 = vmatpush1.bf16.msra.mxu0 %v1426
    %1449 = vmatprep.subr.bf16.mxu0 0
    %1450 = vmatpush1.bf16.msra.mxu0 %v1427
    %1451 = vmatprep.subr.bf16.mxu0 0
    %1452 = vmatpush1.bf16.msra.mxu0 %v1428
    %1453 = vmatprep.subr.bf16.mxu0 0
    %1454 = vmatpush1.bf16.msra.mxu0 0
    %1455 = vmatprep.subr.bf16.mxu0 0
    %1456 = vmatpush1.bf16.msra.mxu0 0
    %1457 = vmatprep.subr.bf16.mxu0 0
    %1458 = vmatpush1.bf16.msra.mxu0 0
    %1459 = vmatprep.subr.bf16.mxu0 0
    %1460 = vmatpush1.bf16.msra.mxu0 0
    %1461 = vmatprep.subr.bf16.mxu0 0
    %1462 = vmatpush1.bf16.msra.mxu0 0
    %1463 = vmatprep.subr.bf16.mxu0 0
    %1464 = vmatpush1.bf16.msra.mxu0 0
    %1465 = vmatprep.subr.bf16.mxu0 0
    %1466 = vmatpush1.bf16.msra.mxu0 0
    %1467 = vmatprep.subr.bf16.mxu0 0
    %1468 = vmatpush1.bf16.msra.mxu0 0
    %1469 = vmatprep.mubr.bf16.mxu0 0
    %1470 = vmatmul.mubr.bf16.gmra.mrb[0].mxu0 %v1262
    %v1471 = vpop.f32.mrb[0].mxu0
    %v1472 = vadd.f32 %v1383, %v1471
    %v1473 = vpop.f32.mrb[0].mxu0
    %v1474 = vpop.f32.mrb[0].mxu0
    %v1475 = vadd.f32 %v1386, %v1474
    %v1476 = vpop.f32.mrb[0].mxu0
    %1477 = vdwg.mxu0
    %v1478 = vld [vmem:[#allocation2 + $0x2] sm:$0xff]
    %v1479 = vld [vmem:[#allocation2 + $0xa] sm:$0xff]
    %v1480 = vpack.c.bf16 %v1479, %v1478
    %s1481 = scalar_lea.vmem [#allocation6], 704
    %v1482 = vld [vmem:[%s1481] sm:$0xf]
    %v1483 = vld [vmem:[%s1481 + $0x4] sm:$0xf]
    %v1484 = vld [vmem:[%s1481 + $0x8] sm:$0xf]
    %v1485 = vld [vmem:[%s1481 + $0xc] sm:$0xf]
    %v1486 = vld [vmem:[%s1481 + $0x10] sm:$0xf]
    %v1487 = vld [vmem:[%s1481 + $0x14] sm:$0xf]
    %v1488 = vld [vmem:[%s1481 + $0x18] sm:$0xf]
    %v1489 = vld [vmem:[%s1481 + $0x1c] sm:$0xf]
    %v1490 = vld [vmem:[%s1481 + $0x20] sm:$0xf]
    %v1491 = vld [vmem:[%s1481 + $0x24] sm:$0xf]
    %v1492 = vld [vmem:[%s1481 + $0x28] sm:$0xf]
    %v1493 = vld [vmem:[%s1481 + $0x2c] sm:$0xf]
    %v1494 = vld [vmem:[%s1481 + $0x30] sm:$0xf]
    %v1495 = vld [vmem:[%s1481 + $0x34] sm:$0xf]
    %v1496 = vld [vmem:[%s1481 + $0x38] sm:$0xf]
    %v1497 = vld [vmem:[%s1481 + $0x3c] sm:$0xf]
    %v1514 = vunpack.c.l.b16 %v1482
    %v1515 = vunpack.c.l.b16 %v1483
    %v1516 = vunpack.c.l.b16 %v1484
    %v1517 = vunpack.c.l.b16 %v1485
    %v1518 = vunpack.c.l.b16 %v1486
    %v1519 = vunpack.c.l.b16 %v1487
    %v1520 = vunpack.c.l.b16 %v1488
    %v1521 = vunpack.c.l.b16 %v1489
    %v1522 = vunpack.c.l.b16 %v1490
    %v1523 = vunpack.c.l.b16 %v1491
    %v1524 = vunpack.c.l.b16 %v1492
    %v1525 = vunpack.c.l.b16 %v1493
    %v1526 = vunpack.c.l.b16 %v1494
    %v1527 = vunpack.c.l.b16 %v1495
    %v1528 = vunpack.c.l.b16 %v1496
    %v1529 = vunpack.c.l.b16 %v1497
    %v1530 = vpack.c.b16 %v1515, %v1514
    %v1531 = vpack.c.b16 %v1517, %v1516
    %v1532 = vpack.c.b16 %v1519, %v1518
    %v1533 = vpack.c.b16 %v1521, %v1520
    %v1534 = vpack.c.b16 %v1523, %v1522
    %v1535 = vpack.c.b16 %v1525, %v1524
    %v1536 = vpack.c.b16 %v1527, %v1526
    %v1537 = vpack.c.b16 %v1529, %v1528
    %1546 = vmatprep.subr.bf16.mxu0 0
    %1547 = vmatpush1.bf16.msra.mxu0 %v1530
    %1548 = vmatprep.subr.bf16.mxu0 0
    %1549 = vmatpush1.bf16.msra.mxu0 %v1531
    %1550 = vmatprep.subr.bf16.mxu0 0
    %1551 = vmatpush1.bf16.msra.mxu0 %v1532
    %1552 = vmatprep.subr.bf16.mxu0 0
    %1553 = vmatpush1.bf16.msra.mxu0 %v1533
    %1554 = vmatprep.subr.bf16.mxu0 0
    %1555 = vmatpush1.bf16.msra.mxu0 %v1534
    %1556 = vmatprep.subr.bf16.mxu0 0
    %1557 = vmatpush1.bf16.msra.mxu0 %v1535
    %1558 = vmatprep.subr.bf16.mxu0 0
    %1559 = vmatpush1.bf16.msra.mxu0 %v1536
    %1560 = vmatprep.subr.bf16.mxu0 0
    %1561 = vmatpush1.bf16.msra.mxu0 %v1537
    %1562 = vmatprep.subr.bf16.mxu0 0
    %1563 = vmatpush1.bf16.msra.mxu0 0
    %1564 = vmatprep.subr.bf16.mxu0 0
    %1565 = vmatpush1.bf16.msra.mxu0 0
    %1566 = vmatprep.subr.bf16.mxu0 0
    %1567 = vmatpush1.bf16.msra.mxu0 0
    %1568 = vmatprep.subr.bf16.mxu0 0
    %1569 = vmatpush1.bf16.msra.mxu0 0
    %1570 = vmatprep.subr.bf16.mxu0 0
    %1571 = vmatpush1.bf16.msra.mxu0 0
    %1572 = vmatprep.subr.bf16.mxu0 0
    %1573 = vmatpush1.bf16.msra.mxu0 0
    %1574 = vmatprep.subr.bf16.mxu0 0
    %1575 = vmatpush1.bf16.msra.mxu0 0
    %1576 = vmatprep.subr.bf16.mxu0 0
    %1577 = vmatpush1.bf16.msra.mxu0 0
    %1578 = vmatprep.mubr.bf16.mxu0 0
    %1579 = vmatmul.mubr.bf16.gmra.mrb[0].mxu0 %v1480
    %v1580 = vpop.f32.mrb[0].mxu0
    %v1581 = vadd.f32 0.0, %v1580
    %v1582 = vpop.f32.mrb[0].mxu0
    %v1583 = vpop.f32.mrb[0].mxu0
    %v1584 = vadd.f32 0.0, %v1583
    %v1585 = vpop.f32.mrb[0].mxu0
    %1586 = vdwg.mxu0
    %v1587 = vadd.f32 %v1472, %v1581
    %v1588 = vadd.f32 %v1475, %v1584
    %v1589 = vadd.f32 %v854, %v1587
    %v1590 = vadd.f32 %v855, %v1588
    %v1591 = vmax.f32 %v1589, 0.0
    %v1592 = vmax.f32 %v1590, 0.0
    %v1593 = vadd.f32 %v1591, %v1592
    %v1594 = vrot.slane %v1593, 4
    %v1595 = vadd.f32 %v1593, %v1594
    %v1596 = vrot.slane %v1595, 2
    %v1597 = vadd.f32 %v1595, %v1596
    %v1598 = vrot.slane %v1597, 1
    %v1599 = vadd.f32 %v1597, %v1598
    %1600 = vrot.lane.b32.xlu0 %v1599, 4
    %v1601 = vpop.permute.xlu0 %1600
    %v1602 = vadd.f32 %v1599, %v1601
    %1603 = vrot.lane.b32.xlu0 %v1602, 8
    %v1604 = vpop.permute.xlu0 %1603
    %v1605 = vadd.f32 %v1602, %v1604
    %1606 = vrot.lane.b32.xlu0 %v1605, 16
    %v1607 = vpop.permute.xlu0 %1606
    %v1608 = vadd.f32 %v1605, %v1607
    %1609 = vrot.lane.b32.xlu0 %v1608, 32
    %v1610 = vpop.permute.xlu0 %1609
    %v1611 = vadd.f32 %v1608, %v1610
    %1612 = vrot.lane.b32.xlu0 %v1611, 64
    %v1613 = vpop.permute.xlu0 %1612
    %v1614 = vadd.f32 %v1611, %v1613
    %v1615 = vmul.f32 %v1591, %v1591
    %v1616 = vmul.f32 %v1592, %v1592
    %v1617 = vadd.f32 %v1615, %v1616
    %v1618 = vrot.slane %v1617, 4
    %v1619 = vadd.f32 %v1617, %v1618
    %v1620 = vrot.slane %v1619, 2
    %v1621 = vadd.f32 %v1619, %v1620
    %v1622 = vrot.slane %v1621, 1
    %v1623 = vadd.f32 %v1621, %v1622
    %1624 = vrot.lane.b32.xlu0 %v1623, 4
    %v1625 = vpop.permute.xlu0 %1624
    %v1626 = vadd.f32 %v1623, %v1625
    %1627 = vrot.lane.b32.xlu0 %v1626, 8
    %v1628 = vpop.permute.xlu0 %1627
    %v1629 = vadd.f32 %v1626, %v1628
    %1630 = vrot.lane.b32.xlu0 %v1629, 16
    %v1631 = vpop.permute.xlu0 %1630
    %v1632 = vadd.f32 %v1629, %v1631
    %1633 = vrot.lane.b32.xlu0 %v1632, 32
    %v1634 = vpop.permute.xlu0 %1633
    %v1635 = vadd.f32 %v1632, %v1634
    %1636 = vrot.lane.b32.xlu0 %v1635, 64
    %v1637 = vpop.permute.xlu0 %1636
    %v1638 = vadd.f32 %v1635, %v1637
    %v1639 = vmul.f32 %v1614, 0.001953125
    %v1640 = vmul.f32 %v1638, 0.001953125
    %v1641 = vmul.f32 %v1639, %v1639
    %v1642 = vsub.f32 %v1640, %v1641
    %v1643 = vld [vmem:[%s2 + $0x3] sm:$0x1]
    %v1644 = vadd.f32 %v1642, 1e-05
    %v1645 = vrsqrt.pop %v1644
    %v1646 = vmul.f32 %v1643, %v1645
    %v1647 = vld [vmem:[%s3 + $0x3] sm:$0x1]
    %v1648 = vmul.f32 %v1639, %v1646
    %v1649 = vsub.f32 %v1647, %v1648
    %v1650 = vlaneseq
    %v1651 = vshrl.u32 %v1650, 7
    %v1652 = vsub.s32 0, %v1651
    %v1653 = vrot.slane %v1646, %v1652
    %v1654 = vmul.f32 %v1591, %v1653
    %v1655 = vmul.f32 %v1592, %v1653
    %v1656 = vlaneseq
    %v1657 = vshrl.u32 %v1656, 7
    %v1658 = vsub.s32 0, %v1657
    %v1659 = vrot.slane %v1649, %v1658
    %v1660 = vadd.f32 %v1654, %v1659
    %v1661 = vadd.f32 %v1655, %v1659
    %1662 = vst [vmem:[#allocation8] sm:$0xff] %v1660
    %1663 = vst [vmem:[#allocation8 + $0x8] sm:$0xff] %v1661
    // Predicated region
    $region26: #{tpu_custom_call.1} parent=1 // pred_check
      _
    $region27: #{tpu_custom_call.1} parent=1 // pred_check_branch
      %1665 = sbr.rel (0) target = $region29
    $region28: #{tpu_custom_call.1} parent=1 // pred_region
      %s1667 = ssub.s32 256, 256
      %1668 = vsyncadd [#allocation5], %s1667
      %s1669 = sshll.u32 [#allocation8], 4
      %s1670 = int_to_ptr.vmem [resolvable:$true] %s1669
      %1675 = dma.vmem_to_hbm [thread:$0]  %s1670, 256, %s4, [#allocation5], 128, 128, 8
    $region29: #{tpu_custom_call.1} parent=1 // pred_fallthru
      _
    // Predicated region
    $region30: #{tpu_custom_call.1} parent=1 // pred_check
      _
    $region31: #{tpu_custom_call.1} parent=1 // pred_check_branch
      %1677 = sbr.rel (0) target = $region33
    $region32: #{tpu_custom_call.1} parent=1 // pred_region
      %1678 = dma.done [#allocation5], 256
    $region33: #{tpu_custom_call.1} parent=1 // pred_fallthru
      _
    %1679 = vsyncpa [#allocation4], 1
    %1680 = vsyncpa [#allocation7], 1
    %1681 = vsyncpa [#allocation5], 1

</llo_original>
